<compile_context>
chip_gen: v5e
topology: v5e:2x2
jax: 0.10.0
libtpu: 0.0.40
codegen_flags: <defaults>
</compile_context>

<pallas_src>
import jax
import jax.numpy as jnp
from jax.experimental import pallas as pl
from jax.experimental.pallas import tpu as pltpu


# ----------------------------------------------------------------------------
# Pallas kernel: fused 4-layer MLP  (Linear -> ELU) x3 -> Linear
# ----------------------------------------------------------------------------
def _elu(x):
    # torch.nn.ELU(alpha=1.0):  x if x > 0 else exp(x) - 1   (f32 math)
    return jnp.where(x > 0.0, x, jnp.exp(jnp.minimum(x, 0.0)) - 1.0)


def _mlp_kernel(x_ref,
                w1_ref, b1_ref,
                w2_ref, b2_ref,
                w3_ref, b3_ref,
                w4_ref, b4_ref,
                o_ref):
    # layer 1: bf16 matmul, f32 accumulate / bias / ELU
    h = jnp.dot(x_ref[...], w1_ref[...], preferred_element_type=jnp.float32)
    h = _elu(h + b1_ref[...]).astype(w2_ref.dtype)
    # layer 2
    h = jnp.dot(h, w2_ref[...], preferred_element_type=jnp.float32)
    h = _elu(h + b2_ref[...]).astype(w3_ref.dtype)
    # layer 3 (output zero-padded 64 -> 128 lanes)
    h = jnp.dot(h, w3_ref[...], preferred_element_type=jnp.float32)
    h = _elu(h + b3_ref[...]).astype(w4_ref.dtype)
    # layer 4 (output zero-padded n_skills -> 128 lanes => unmasked lane-dense store)
    out = jnp.dot(h, w4_ref[...], preferred_element_type=jnp.float32) + b4_ref[...]
    o_ref[...] = out.astype(o_ref.dtype)
    # TODO(synk): if used inside a training step, fuse the loss / next
    # elementwise consumer into this epilogue instead of materializing [B, n].


# ----------------------------------------------------------------------------
# Wrapper
# ----------------------------------------------------------------------------
def _round_up(n, m=128):
    return ((n + m - 1) // m) * m


def _pick_batch_tile(B):
    # multiple of 8, at least 2 grid steps when possible, capped at 512 rows
    if B <= 8:
        return B
    for t in (512, 256, 128, 64, 32, 16, 8):
        if t <= B // 2 and B % t == 0:
            return t
    return B


def discriminator_lsd_forward(states, params, n_skills, *, batch_tile=None):
    """states: [B, n_states] float.  params: list of (W[in,out] bf16, b[1,out] f32),
    feature dims already lane-padded.  Returns [B, n_skills] float32."""
    B, n_states = states.shape
    (w1, b1), (w2, b2), (w3, b3), (w4, b4) = params
    out_pad = w4.shape[1]
    assert w1.shape[0] == n_states

    if batch_tile is None:
        batch_tile = _pick_batch_tile(B)
    assert B % batch_tile == 0 and (batch_tile % 8 == 0 or batch_tile == B)

    x = states.astype(w1.dtype)  # bf16 matmul input; accumulation stays f32

    def full_spec(shape):
        return pl.BlockSpec(shape, lambda i: (0, 0))

    in_specs = [
        pl.BlockSpec((batch_tile, n_states), lambda i: (i, 0)),  # x tiled on batch
        full_spec(w1.shape), full_spec(b1.shape),
        full_spec(w2.shape), full_spec(b2.shape),
        full_spec(w3.shape), full_spec(b3.shape),
        full_spec(w4.shape), full_spec(b4.shape),
    ]
    out_spec = pl.BlockSpec((batch_tile, out_pad), lambda i: (i, 0))

    flops = 2 * B * sum(int(w.shape[0]) * int(w.shape[1]) for w, _ in params)
    transcendentals = B * sum(int(w.shape[1]) for w, _ in params[:-1])  # exp in ELU
    bytes_accessed = (
        x.size * x.dtype.itemsize
        + sum(int(w.size) * w.dtype.itemsize + int(b.size) * b.dtype.itemsize
              for w, b in params)
        + B * out_pad * 4)

    out_padded = pl.pallas_call(
        _mlp_kernel,
        out_shape=jax.ShapeDtypeStruct((B, out_pad), jnp.float32),
        grid_spec=pltpu.PrefetchScalarGridSpec(
            num_scalar_prefetch=0,
            grid=(B // batch_tile,),
            in_specs=in_specs,
            out_specs=out_spec,
        ),
        compiler_params=pltpu.CompilerParams(
            dimension_semantics=("parallel",)),
        cost_estimate=pl.CostEstimate(
            flops=int(flops),
            transcendentals=int(transcendentals),
            bytes_accessed=int(bytes_accessed)),
    )(x, w1, b1, w2, b2, w3, b3, w4, b4)

    # drop the zero-padded lanes
    return out_padded[:, :n_skills]


# ----------------------------------------------------------------------------
# Parameter setup (deterministic), incl. spectral normalization (plain JAX)
# ----------------------------------------------------------------------------
def _init_linear(key, fan_in, fan_out):
    # PyTorch default nn.Linear init: U(-1/sqrt(fan_in), 1/sqrt(fan_in))
    kw, kb = jax.random.split(key)
    bound = 1.0 / jnp.sqrt(float(fan_in))
    w = jax.random.uniform(kw, (fan_out, fan_in), jnp.float32, -bound, bound)
    b = jax.random.uniform(kb, (fan_out,), jnp.float32, -bound, bound)
    return w, b


def _spectral_norm(key, w, n_power_iterations=10, eps=1e-12):
    # Mirrors torch.nn.utils.parametrizations.spectral_norm at eval:
    # sigma via power iteration on W (out, in);  W_sn = W / sigma.
    out_dim, in_dim = w.shape
    u = jax.random.normal(key, (out_dim,), jnp.float32)
    u = u / (jnp.linalg.norm(u) + eps)
    v = None
    for _ in range(n_power_iterations):
        v = w.T @ u
        v = v / (jnp.linalg.norm(v) + eps)
        u = w @ v
        u = u / (jnp.linalg.norm(u) + eps)
    sigma = u @ (w @ v)
    return w / sigma


def make_params(key, n_states, n_skills, hidden_dims=(256, 128, 64),
                weight_dtype=jnp.bfloat16):
    dims = [n_states] + list(hidden_dims) + [n_skills]
    # lane-pad every feature dim except the raw input dim up to 128
    padded = [n_states] + [_round_up(d) for d in hidden_dims] + [_round_up(n_skills)]
    params = []
    for i in range(len(dims) - 1):
        key, k_init, k_sn = jax.random.split(key, 3)
        w, b = _init_linear(k_init, dims[i], dims[i + 1])       # (out, in), (out,)
        w_sn = _spectral_norm(k_sn, w)
        wt = jnp.asarray(w_sn.T, jnp.float32)                   # (in, out)
        pad_in = padded[i] - dims[i]
        pad_out = padded[i + 1] - dims[i + 1]
        wt = jnp.pad(wt, ((0, pad_in), (0, pad_out)))           # zero-pad
        bp = jnp.pad(b, (0, pad_out))
        params.append((wt.astype(weight_dtype),
                       jnp.asarray(bp[None, :], jnp.float32)))
    return params


# ----------------------------------------------------------------------------
# Pure-JAX reference (f32 math, same quantized weights) for correctness check
# ----------------------------------------------------------------------------
def reference_forward(states, params, n_skills):
    h = states.astype(jnp.float32)
    n = len(params)
    for i, (w, b) in enumerate(params):
        h = h @ w.astype(jnp.float32) + b.astype(jnp.float32)
        if i != n - 1:
            h = jnp.where(h > 0.0, h, jnp.exp(jnp.minimum(h, 0.0)) - 1.0)
    return h[:, :n_skills]


if __name__ == "__main__":
    key = jax.random.PRNGKey(0)
    k_param, k_x = jax.random.split(key)

    n_states = 32
    n_skills = 8
    batch = 256  # small, but >= 2 batch tiles so the pipeline / megacore is real

    params = make_params(k_param, n_states, n_skills, hidden_dims=(256, 128, 64))
    states = jax.random.normal(k_x, (batch, n_states), jnp.float32)

    out = discriminator_lsd_forward(states, params, n_skills)
    out = jax.block_until_ready(out)

    ref = reference_forward(states, params, n_skills)
    assert out.shape == (batch, n_skills), out.shape
    max_err = float(jnp.max(jnp.abs(out - ref)))
    # bf16 matmul inputs with f32 accumulation -> loosened tolerance
    assert jnp.allclose(out, ref, atol=5e-2, rtol=5e-2), max_err

    print("KERNEL_OK")
</pallas_src>

<mosaic_0001>
module attributes {stable_mosaic.version = 11 : i64} {
  func.func @_mlp_kernel(%arg0: i32, %arg1: memref<128x32xbf16, #tpu.memory_space<vmem>>, %arg2: memref<32x256xbf16, #tpu.memory_space<vmem>>, %arg3: memref<1x256xf32, #tpu.memory_space<vmem>>, %arg4: memref<256x128xbf16, #tpu.memory_space<vmem>>, %arg5: memref<1x128xf32, #tpu.memory_space<vmem>>, %arg6: memref<128x128xbf16, #tpu.memory_space<vmem>>, %arg7: memref<1x128xf32, #tpu.memory_space<vmem>>, %arg8: memref<128x128xbf16, #tpu.memory_space<vmem>>, %arg9: memref<1x128xf32, #tpu.memory_space<vmem>>, %arg10: memref<128x128xf32, #tpu.memory_space<vmem>>) attributes {dimension_semantics = [#tpu.dimension_semantics<parallel>], iteration_bounds = array<i64: 2>, scalar_prefetch = 0 : i64, scratch_operands = 0 : i64, tpu.core_type = #tpu.core_type<tc>, window_params = [{transform_indices = @transform_0, window_bounds = array<i64: 128, 32>}, {pipeline_mode = #tpu.pipeline_mode<synchronous>, transform_indices = @transform_1, window_bounds = array<i64: 32, 256>}, {pipeline_mode = #tpu.pipeline_mode<synchronous>, transform_indices = @transform_2, window_bounds = array<i64: 1, 256>}, {pipeline_mode = #tpu.pipeline_mode<synchronous>, transform_indices = @transform_3, window_bounds = array<i64: 256, 128>}, {pipeline_mode = #tpu.pipeline_mode<synchronous>, transform_indices = @transform_4, window_bounds = array<i64: 1, 128>}, {pipeline_mode = #tpu.pipeline_mode<synchronous>, transform_indices = @transform_5, window_bounds = array<i64: 128, 128>}, {pipeline_mode = #tpu.pipeline_mode<synchronous>, transform_indices = @transform_6, window_bounds = array<i64: 1, 128>}, {pipeline_mode = #tpu.pipeline_mode<synchronous>, transform_indices = @transform_7, window_bounds = array<i64: 128, 128>}, {pipeline_mode = #tpu.pipeline_mode<synchronous>, transform_indices = @transform_8, window_bounds = array<i64: 1, 128>}, {transform_indices = @transform_9, window_bounds = array<i64: 128, 128>}]} {
    %c0 = arith.constant 0 : index
    %c0_0 = arith.constant 0 : index
    %0 = vector.load %arg1[%c0, %c0_0] : memref<128x32xbf16, #tpu.memory_space<vmem>>, vector<128x32xbf16>
    %c0_1 = arith.constant 0 : index
    %c0_2 = arith.constant 0 : index
    %1 = vector.load %arg2[%c0_1, %c0_2] : memref<32x256xbf16, #tpu.memory_space<vmem>>, vector<32x256xbf16>
    %cst = arith.constant dense<0.000000e+00> : vector<128x256xf32>
    %2 = tpu.matmul %0, %1, %cst {dimension_numbers = #tpu.dot_dimension_numbers<[1], [0], [0], [1], [0, 0, 1, 1], [], []>} : vector<128x32xbf16>, vector<32x256xbf16>, vector<128x256xf32> -> vector<128x256xf32>
    %c0_3 = arith.constant 0 : index
    %c0_4 = arith.constant 0 : index
    %3 = vector.load %arg3[%c0_3, %c0_4] : memref<1x256xf32, #tpu.memory_space<vmem>>, vector<1x256xf32>
    %4 = vector.broadcast %3 : vector<1x256xf32> to vector<128x256xf32>
    %5 = arith.addf %2, %4 : vector<128x256xf32>
    %cst_5 = arith.constant 0.000000e+00 : f32
    %6 = vector.broadcast %cst_5 : f32 to vector<128x256xf32>
    %7 = arith.cmpf ogt, %5, %6 : vector<128x256xf32>
    %cst_6 = arith.constant 0.000000e+00 : f32
    %8 = vector.broadcast %cst_6 : f32 to vector<128x256xf32>
    %9 = arith.minimumf %5, %8 : vector<128x256xf32>
    %10 = math.exp %9 : vector<128x256xf32>
    %cst_7 = arith.constant 1.000000e+00 : f32
    %11 = vector.broadcast %cst_7 : f32 to vector<128x256xf32>
    %12 = arith.subf %10, %11 : vector<128x256xf32>
    %13 = arith.select %7, %5, %12 : vector<128x256xi1>, vector<128x256xf32>
    %14 = arith.truncf %13 : vector<128x256xf32> to vector<128x256xbf16>
    %c0_8 = arith.constant 0 : index
    %c0_9 = arith.constant 0 : index
    %15 = vector.load %arg4[%c0_8, %c0_9] : memref<256x128xbf16, #tpu.memory_space<vmem>>, vector<256x128xbf16>
    %cst_10 = arith.constant dense<0.000000e+00> : vector<128x128xf32>
    %16 = tpu.matmul %14, %15, %cst_10 {dimension_numbers = #tpu.dot_dimension_numbers<[1], [0], [0], [1], [0, 0, 1, 1], [], []>} : vector<128x256xbf16>, vector<256x128xbf16>, vector<128x128xf32> -> vector<128x128xf32>
    %c0_11 = arith.constant 0 : index
    %c0_12 = arith.constant 0 : index
    %17 = vector.load %arg5[%c0_11, %c0_12] : memref<1x128xf32, #tpu.memory_space<vmem>>, vector<1x128xf32>
    %18 = vector.broadcast %17 : vector<1x128xf32> to vector<128x128xf32>
    %19 = arith.addf %16, %18 : vector<128x128xf32>
    %cst_13 = arith.constant 0.000000e+00 : f32
    %20 = vector.broadcast %cst_13 : f32 to vector<128x128xf32>
    %21 = arith.cmpf ogt, %19, %20 : vector<128x128xf32>
    %cst_14 = arith.constant 0.000000e+00 : f32
    %22 = vector.broadcast %cst_14 : f32 to vector<128x128xf32>
    %23 = arith.minimumf %19, %22 : vector<128x128xf32>
    %24 = math.exp %23 : vector<128x128xf32>
    %cst_15 = arith.constant 1.000000e+00 : f32
    %25 = vector.broadcast %cst_15 : f32 to vector<128x128xf32>
    %26 = arith.subf %24, %25 : vector<128x128xf32>
    %27 = arith.select %21, %19, %26 : vector<128x128xi1>, vector<128x128xf32>
    %28 = arith.truncf %27 : vector<128x128xf32> to vector<128x128xbf16>
    %c0_16 = arith.constant 0 : index
    %c0_17 = arith.constant 0 : index
    %29 = vector.load %arg6[%c0_16, %c0_17] : memref<128x128xbf16, #tpu.memory_space<vmem>>, vector<128x128xbf16>
    %cst_18 = arith.constant dense<0.000000e+00> : vector<128x128xf32>
    %30 = tpu.matmul %28, %29, %cst_18 {dimension_numbers = #tpu.dot_dimension_numbers<[1], [0], [0], [1], [0, 0, 1, 1], [], []>} : vector<128x128xbf16>, vector<128x128xbf16>, vector<128x128xf32> -> vector<128x128xf32>
    %c0_19 = arith.constant 0 : index
    %c0_20 = arith.constant 0 : index
    %31 = vector.load %arg7[%c0_19, %c0_20] : memref<1x128xf32, #tpu.memory_space<vmem>>, vector<1x128xf32>
    %32 = vector.broadcast %31 : vector<1x128xf32> to vector<128x128xf32>
    %33 = arith.addf %30, %32 : vector<128x128xf32>
    %cst_21 = arith.constant 0.000000e+00 : f32
    %34 = vector.broadcast %cst_21 : f32 to vector<128x128xf32>
    %35 = arith.cmpf ogt, %33, %34 : vector<128x128xf32>
    %cst_22 = arith.constant 0.000000e+00 : f32
    %36 = vector.broadcast %cst_22 : f32 to vector<128x128xf32>
    %37 = arith.minimumf %33, %36 : vector<128x128xf32>
    %38 = math.exp %37 : vector<128x128xf32>
    %cst_23 = arith.constant 1.000000e+00 : f32
    %39 = vector.broadcast %cst_23 : f32 to vector<128x128xf32>
    %40 = arith.subf %38, %39 : vector<128x128xf32>
    %41 = arith.select %35, %33, %40 : vector<128x128xi1>, vector<128x128xf32>
    %42 = arith.truncf %41 : vector<128x128xf32> to vector<128x128xbf16>
    %c0_24 = arith.constant 0 : index
    %c0_25 = arith.constant 0 : index
    %43 = vector.load %arg8[%c0_24, %c0_25] : memref<128x128xbf16, #tpu.memory_space<vmem>>, vector<128x128xbf16>
    %cst_26 = arith.constant dense<0.000000e+00> : vector<128x128xf32>
    %44 = tpu.matmul %42, %43, %cst_26 {dimension_numbers = #tpu.dot_dimension_numbers<[1], [0], [0], [1], [0, 0, 1, 1], [], []>} : vector<128x128xbf16>, vector<128x128xbf16>, vector<128x128xf32> -> vector<128x128xf32>
    %c0_27 = arith.constant 0 : index
    %c0_28 = arith.constant 0 : index
    %45 = vector.load %arg9[%c0_27, %c0_28] : memref<1x128xf32, #tpu.memory_space<vmem>>, vector<1x128xf32>
    %46 = vector.broadcast %45 : vector<1x128xf32> to vector<128x128xf32>
    %47 = arith.addf %44, %46 : vector<128x128xf32>
    %c0_29 = arith.constant 0 : index
    %c0_30 = arith.constant 0 : index
    %48 = vector.load %arg10[%c0_29, %c0_30] : memref<128x128xf32, #tpu.memory_space<vmem>>, vector<128x128xf32>
    tpu.vector_store %arg10[%c0_29, %c0_30], %47 {strides = array<i32>} : memref<128x128xf32, #tpu.memory_space<vmem>>, vector<128x128xf32>,
    return
  }
  func.func @transform_0(%arg0: i32) -> (i32, i32) {
    %c0_i32 = arith.constant 0 : i32
    %c0_i32_0 = arith.constant 0 : i32
    return %arg0, %c0_i32 : i32, i32
  }
  func.func @transform_1(%arg0: i32) -> (i32, i32) {
    %c0_i32 = arith.constant 0 : i32
    %c0_i32_0 = arith.constant 0 : i32
    %c0_i32_1 = arith.constant 0 : i32
    return %c0_i32, %c0_i32_0 : i32, i32
  }
  func.func @transform_2(%arg0: i32) -> (i32, i32) {
    %c0_i32 = arith.constant 0 : i32
    %c0_i32_0 = arith.constant 0 : i32
    %c0_i32_1 = arith.constant 0 : i32
    return %c0_i32, %c0_i32_0 : i32, i32
  }
  func.func @transform_3(%arg0: i32) -> (i32, i32) {
    %c0_i32 = arith.constant 0 : i32
    %c0_i32_0 = arith.constant 0 : i32
    %c0_i32_1 = arith.constant 0 : i32
    return %c0_i32, %c0_i32_0 : i32, i32
  }
  func.func @transform_4(%arg0: i32) -> (i32, i32) {
    %c0_i32 = arith.constant 0 : i32
    %c0_i32_0 = arith.constant 0 : i32
    %c0_i32_1 = arith.constant 0 : i32
    return %c0_i32, %c0_i32_0 : i32, i32
  }
  func.func @transform_5(%arg0: i32) -> (i32, i32) {
    %c0_i32 = arith.constant 0 : i32
    %c0_i32_0 = arith.constant 0 : i32
    %c0_i32_1 = arith.constant 0 : i32
    return %c0_i32, %c0_i32_0 : i32, i32
  }
  func.func @transform_6(%arg0: i32) -> (i32, i32) {
    %c0_i32 = arith.constant 0 : i32
    %c0_i32_0 = arith.constant 0 : i32
    %c0_i32_1 = arith.constant 0 : i32
    return %c0_i32, %c0_i32_0 : i32, i32
  }
  func.func @transform_7(%arg0: i32) -> (i32, i32) {
    %c0_i32 = arith.constant 0 : i32
    %c0_i32_0 = arith.constant 0 : i32
    %c0_i32_1 = arith.constant 0 : i32
    return %c0_i32, %c0_i32_0 : i32, i32
  }
  func.func @transform_8(%arg0: i32) -> (i32, i32) {
    %c0_i32 = arith.constant 0 : i32
    %c0_i32_0 = arith.constant 0 : i32
    %c0_i32_1 = arith.constant 0 : i32
    return %c0_i32, %c0_i32_0 : i32, i32
  }
  func.func @transform_9(%arg0: i32) -> (i32, i32) {
    %c0_i32 = arith.constant 0 : i32
    %c0_i32_0 = arith.constant 0 : i32
    return %arg0, %c0_i32 : i32, i32
  }
}

</mosaic_0001>

<llo_original>
// kernel: tpu_custom_call.1
$region0: #{tpu_custom_call.1}
  #allocation0 [shape = 'u32[]', space=smem, size = 0x4, offset = 0x4, fixed_abs, tag = 'smem constant byte address 0x4 - core index']
  #allocation1 [shape = 'u32[72,128]{1,0:T(1,128)}', space=vmem, size = 0x9000, scoped, tag = 'internal scratch']
  %s0 = inlined_call_operand.vmem [shape: bf16[256,32], index: 0, kind: input, shape index: {}]
  %s1 = inlined_call_operand.vmem [shape: bf16[32,256], index: 1, kind: input, shape index: {}]
  %s2 = inlined_call_operand.vmem [shape: f32[1,256], index: 2, kind: input, shape index: {}]
  %s3 = inlined_call_operand.vmem [shape: bf16[256,128], index: 3, kind: input, shape index: {}]
  %s4 = inlined_call_operand.vmem [shape: f32[1,128], index: 4, kind: input, shape index: {}]
  %s5 = inlined_call_operand.hbm [shape: bf16[128,128], index: 5, kind: input, shape index: {}]
  %s6 = inlined_call_operand.vmem [shape: f32[1,128], index: 6, kind: input, shape index: {}]
  %s7 = inlined_call_operand.hbm [shape: bf16[128,128], index: 7, kind: input, shape index: {}]
  %s8 = inlined_call_operand.vmem [shape: f32[1,128], index: 8, kind: input, shape index: {}]
  %s9 = inlined_call_operand.hbm [shape: f32[256,128], index: 9, kind: output, shape index: {}]
  %s10 = sld [smem:[#allocation0]]
  $region77: #{tpu_custom_call.1} parent=0
    _
  %s12 = ssub.s32 1, %s10
  %s13 = scalar_select 0, %s12, %s10
  $region1: #{tpu_custom_call.1} parent=0
    #allocation2 [shape = 'u8[32768]{0}', space=vmem, size = 0x8000, scoped, tag = 'input window, operand 5, single buffered']
    #allocation3 [shape = 's32[2]{0}', space=sflag, size = 0x8, scoped, tag = 'scoped memory for tpu_custom_call.1']
    #allocation4 [shape = 's32[2]{0}', space=sflag, size = 0x8, scoped, tag = 'scoped memory for tpu_custom_call.1']
    #allocation5 [shape = 'u8[32768]{0}', space=vmem, size = 0x8000, scoped, tag = 'input window, operand 7, single buffered']
    #allocation6 [shape = 's32[1]{0}', space=sflag, size = 0x4, scoped, tag = 'scoped memory for tpu_custom_call.1']
    #allocation7 [shape = 'u8[131072]{0}', space=vmem, size = 0x20000, scoped, tag = 'output window, operand 0']
    %14 = vsyncpa [#allocation3], 0
    %15 = vsyncpa [#allocation6], 0
    %16 = vsyncpa [#allocation4], 0
    %s17 = scalar_lea.sflag [#allocation4], 1
    %18 = vsyncpa %s17, 0
    loop: start=0, step=1, limit=4
    $region2: #{tpu_custom_call.1} parent=1 // loop_pre_header
      _
    $region3: #{tpu_custom_call.1} parent=1 // loop_header
      %s20 = sphi 0, %s24
      %p21 = scmp.ge.s32.totalorder %s20, 4
      %s30 = sphi 0, %s32
      %s33 = sphi 0, %s30
      %s34 = sphi 0, %s33
      %s50 = sphi 0, %s34
      %s54 = sphi 0, %s54
      %s56 = sphi 0, %s54
      %s57 = sphi 0, %s56
      %s71 = sphi 0, %s57
      %s75 = sphi 0, %s75
      %s77 = sphi 0, %s75
      %s78 = sphi 0, %s77
      %s92 = sphi 0, %s78
      %s96 = sphi 0, %s96
      %s98 = sphi 0, %s96
      %s99 = sphi 0, %s98
      %s113 = sphi 0, %s99
      %s117 = sphi 0, %s117
      %s119 = sphi 0, %s117
      %s120 = sphi 0, %s119
      %s134 = sphi 0, %s120
      %s138 = sphi 0, %s138
      %s140 = sphi 0, %s138
      %s141 = sphi 0, %s140
      %s155 = sphi 0, %s141
      %s159 = sphi 0, %s159
      %s161 = sphi 0, %s159
      %s162 = sphi 0, %s161
      %s176 = sphi 0, %s162
      %s180 = sphi 0, %s180
      %s182 = sphi 0, %s180
      %s183 = sphi 0, %s182
      %s197 = sphi 0, %s183
      %s201 = sphi 0, %s201
      %s203 = sphi 0, %s201
      %s204 = sphi 0, %s203
      %s218 = sphi 0, %s204
      %s224 = sphi 0, %s226
      %s227 = sphi 0, %s224
      %s228 = sphi 0, %s227
      %s244 = sphi 0, %s228
    $region4: #{tpu_custom_call.1} parent=1 // loop_header_branch
      %23 = sbr.rel (%p21) target = $region8
    $region5: #{tpu_custom_call.1} parent=1 // loop_body
      %s25 = ssub.s32 %s20, 1
      %s26 = ssub.s32 %s20, 2
      %s27 = sadd.s32 %s20, 1
      %s28 = ssub.s32 %s20, %s27
      %p29 = scmp.eq.s32.totalorder %s28, 0
      %s31 = sadd.s32 %s30, 1
      %s32 = scalar_select %p29, %s30, %s31
      %p35 = pneg %p29
      %p36 = scmp.eq.s32.totalorder %s20, 1
      %p37 = por %p35, %p36
      %p38 = scmp.ne.s32.totalorder %s30, %s33
      %p39 = scmp.eq.s32.totalorder %s20, 0
      %p40 = por %p38, %p39
      %p41 = scmp.ne.s32.totalorder %s30, %s33
      %p42 = scmp.eq.s32.totalorder %s25, 1
      %p43 = por %p41, %p42
      %p44 = scmp.ne.s32.totalorder %s33, %s34
      %p45 = scmp.eq.s32.totalorder %s25, 0
      %p46 = por %p44, %p45
      %p47 = scmp.ne.s32.totalorder %s33, %s34
      %p48 = scmp.eq.s32.totalorder %s26, 1
      %p49 = por %p47, %p48
      %p51 = scmp.ne.s32.totalorder %s34, %s50
      %p52 = scmp.eq.s32.totalorder %s26, 0
      %p53 = por %p51, %p52
      %s55 = sadd.s32 %s54, 1
      %p58 = scmp.eq.s32.totalorder %s20, 1
      %p59 = scmp.ne.s32.totalorder %s54, %s56
      %p60 = scmp.eq.s32.totalorder %s20, 0
      %p61 = por %p59, %p60
      %p62 = scmp.ne.s32.totalorder %s54, %s56
      %p63 = scmp.eq.s32.totalorder %s25, 1
      %p64 = por %p62, %p63
      %p65 = scmp.ne.s32.totalorder %s56, %s57
      %p66 = scmp.eq.s32.totalorder %s25, 0
      %p67 = por %p65, %p66
      %p68 = scmp.ne.s32.totalorder %s56, %s57
      %p69 = scmp.eq.s32.totalorder %s26, 1
      %p70 = por %p68, %p69
      %p72 = scmp.ne.s32.totalorder %s57, %s71
      %p73 = scmp.eq.s32.totalorder %s26, 0
      %p74 = por %p72, %p73
      %s76 = sadd.s32 %s75, 1
      %p79 = scmp.eq.s32.totalorder %s20, 1
      %p80 = scmp.ne.s32.totalorder %s75, %s77
      %p81 = scmp.eq.s32.totalorder %s20, 0
      %p82 = por %p80, %p81
      %p83 = scmp.ne.s32.totalorder %s75, %s77
      %p84 = scmp.eq.s32.totalorder %s25, 1
      %p85 = por %p83, %p84
      %p86 = scmp.ne.s32.totalorder %s77, %s78
      %p87 = scmp.eq.s32.totalorder %s25, 0
      %p88 = por %p86, %p87
      %p89 = scmp.ne.s32.totalorder %s77, %s78
      %p90 = scmp.eq.s32.totalorder %s26, 1
      %p91 = por %p89, %p90
      %p93 = scmp.ne.s32.totalorder %s78, %s92
      %p94 = scmp.eq.s32.totalorder %s26, 0
      %p95 = por %p93, %p94
      %s97 = sadd.s32 %s96, 1
      %p100 = scmp.eq.s32.totalorder %s20, 1
      %p101 = scmp.ne.s32.totalorder %s96, %s98
      %p102 = scmp.eq.s32.totalorder %s20, 0
      %p103 = por %p101, %p102
      %p104 = scmp.ne.s32.totalorder %s96, %s98
      %p105 = scmp.eq.s32.totalorder %s25, 1
      %p106 = por %p104, %p105
      %p107 = scmp.ne.s32.totalorder %s98, %s99
      %p108 = scmp.eq.s32.totalorder %s25, 0
      %p109 = por %p107, %p108
      %p110 = scmp.ne.s32.totalorder %s98, %s99
      %p111 = scmp.eq.s32.totalorder %s26, 1
      %p112 = por %p110, %p111
      %p114 = scmp.ne.s32.totalorder %s99, %s113
      %p115 = scmp.eq.s32.totalorder %s26, 0
      %p116 = por %p114, %p115
      %s118 = sadd.s32 %s117, 1
      %p121 = scmp.eq.s32.totalorder %s20, 1
      %p122 = scmp.ne.s32.totalorder %s117, %s119
      %p123 = scmp.eq.s32.totalorder %s20, 0
      %p124 = por %p122, %p123
      %p125 = scmp.ne.s32.totalorder %s117, %s119
      %p126 = scmp.eq.s32.totalorder %s25, 1
      %p127 = por %p125, %p126
      %p128 = scmp.ne.s32.totalorder %s119, %s120
      %p129 = scmp.eq.s32.totalorder %s25, 0
      %p130 = por %p128, %p129
      %p131 = scmp.ne.s32.totalorder %s119, %s120
      %p132 = scmp.eq.s32.totalorder %s26, 1
      %p133 = por %p131, %p132
      %p135 = scmp.ne.s32.totalorder %s120, %s134
      %p136 = scmp.eq.s32.totalorder %s26, 0
      %p137 = por %p135, %p136
      %s139 = sadd.s32 %s138, 1
      %p142 = scmp.eq.s32.totalorder %s20, 1
      %p143 = scmp.ne.s32.totalorder %s138, %s140
      %p144 = scmp.eq.s32.totalorder %s20, 0
      %p145 = por %p143, %p144
      %p146 = scmp.ne.s32.totalorder %s138, %s140
      %p147 = scmp.eq.s32.totalorder %s25, 1
      %p148 = por %p146, %p147
      %p149 = scmp.ne.s32.totalorder %s140, %s141
      %p150 = scmp.eq.s32.totalorder %s25, 0
      %p151 = por %p149, %p150
      %p152 = scmp.ne.s32.totalorder %s140, %s141
      %p153 = scmp.eq.s32.totalorder %s26, 1
      %p154 = por %p152, %p153
      %p156 = scmp.ne.s32.totalorder %s141, %s155
      %p157 = scmp.eq.s32.totalorder %s26, 0
      %p158 = por %p156, %p157
      %s160 = sadd.s32 %s159, 1
      %p163 = scmp.eq.s32.totalorder %s20, 1
      %p164 = scmp.ne.s32.totalorder %s159, %s161
      %p165 = scmp.eq.s32.totalorder %s20, 0
      %p166 = por %p164, %p165
      %p167 = scmp.ne.s32.totalorder %s159, %s161
      %p168 = scmp.eq.s32.totalorder %s25, 1
      %p169 = por %p167, %p168
      %p170 = scmp.ne.s32.totalorder %s161, %s162
      %p171 = scmp.eq.s32.totalorder %s25, 0
      %p172 = por %p170, %p171
      %p173 = scmp.ne.s32.totalorder %s161, %s162
      %p174 = scmp.eq.s32.totalorder %s26, 1
      %p175 = por %p173, %p174
      %p177 = scmp.ne.s32.totalorder %s162, %s176
      %p178 = scmp.eq.s32.totalorder %s26, 0
      %p179 = por %p177, %p178
      %s181 = sadd.s32 %s180, 1
      %p184 = scmp.eq.s32.totalorder %s20, 1
      %p185 = scmp.ne.s32.totalorder %s180, %s182
      %p186 = scmp.eq.s32.totalorder %s20, 0
      %p187 = por %p185, %p186
      %p188 = scmp.ne.s32.totalorder %s180, %s182
      %p189 = scmp.eq.s32.totalorder %s25, 1
      %p190 = por %p188, %p189
      %p191 = scmp.ne.s32.totalorder %s182, %s183
      %p192 = scmp.eq.s32.totalorder %s25, 0
      %p193 = por %p191, %p192
      %p194 = scmp.ne.s32.totalorder %s182, %s183
      %p195 = scmp.eq.s32.totalorder %s26, 1
      %p196 = por %p194, %p195
      %p198 = scmp.ne.s32.totalorder %s183, %s197
      %p199 = scmp.eq.s32.totalorder %s26, 0
      %p200 = por %p198, %p199
      %s202 = sadd.s32 %s201, 1
      %p205 = scmp.eq.s32.totalorder %s20, 1
      %p206 = scmp.ne.s32.totalorder %s201, %s203
      %p207 = scmp.eq.s32.totalorder %s20, 0
      %p208 = por %p206, %p207
      %p209 = scmp.ne.s32.totalorder %s201, %s203
      %p210 = scmp.eq.s32.totalorder %s25, 1
      %p211 = por %p209, %p210
      %p212 = scmp.ne.s32.totalorder %s203, %s204
      %p213 = scmp.eq.s32.totalorder %s25, 0
      %p214 = por %p212, %p213
      %p215 = scmp.ne.s32.totalorder %s203, %s204
      %p216 = scmp.eq.s32.totalorder %s26, 1
      %p217 = por %p215, %p216
      %p219 = scmp.ne.s32.totalorder %s204, %s218
      %p220 = scmp.eq.s32.totalorder %s26, 0
      %p221 = por %p219, %p220
      %s222 = ssub.s32 %s20, %s27
      %p223 = scmp.eq.s32.totalorder %s222, 0
      %s225 = sadd.s32 %s224, 1
      %s226 = scalar_select %p223, %s224, %s225
      %p229 = pneg %p223
      %p230 = scmp.eq.s32.totalorder %s20, 1
      %p231 = por %p229, %p230
      %p232 = scmp.ne.s32.totalorder %s224, %s227
      %p233 = scmp.eq.s32.totalorder %s20, 0
      %p234 = por %p232, %p233
      %p235 = scmp.ne.s32.totalorder %s224, %s227
      %p236 = scmp.eq.s32.totalorder %s25, 1
      %p237 = por %p235, %p236
      %p238 = scmp.ne.s32.totalorder %s227, %s228
      %p239 = scmp.eq.s32.totalorder %s25, 0
      %p240 = por %p238, %p239
      %p241 = scmp.ne.s32.totalorder %s227, %s228
      %p242 = scmp.eq.s32.totalorder %s26, 1
      %p243 = por %p241, %p242
      %p245 = scmp.ne.s32.totalorder %s228, %s244
      %p246 = scmp.eq.s32.totalorder %s26, 0
      %p247 = por %p245, %p246
      %p248 = scmp.le.s32.totalorder 1, %s20
      %p249 = scmp.lt.s32.totalorder %s20, 3
      %p250 = pnand %p248, %p249
      %p251 = pneg %p250
      // Predicated region
      $region9: #{tpu_custom_call.1} parent=5 // pred_check
        _
      $region10: #{tpu_custom_call.1} parent=5 // pred_check_branch
        %253 = sbr.rel (%p250) target = $region12
      $region11: #{tpu_custom_call.1} parent=5 // pred_region
        %s254 = ssub.s32 %s20, 1
        // Predicated region
        $region13: #{tpu_custom_call.1} parent=11 // pred_check
          %p255 = pneg %p67
        $region14: #{tpu_custom_call.1} parent=11 // pred_check_branch
          %257 = sbr.rel (%p255) target = $region16
        $region15: #{tpu_custom_call.1} parent=11 // pred_region
          _
        $region16: #{tpu_custom_call.1} parent=11 // pred_fallthru
          _
        // Predicated region
        $region17: #{tpu_custom_call.1} parent=11 // pred_check
          %p258 = pneg %p88
        $region18: #{tpu_custom_call.1} parent=11 // pred_check_branch
          %260 = sbr.rel (%p258) target = $region20
        $region19: #{tpu_custom_call.1} parent=11 // pred_region
          _
        $region20: #{tpu_custom_call.1} parent=11 // pred_fallthru
          _
        // Predicated region
        $region21: #{tpu_custom_call.1} parent=11 // pred_check
          %p261 = pneg %p109
        $region22: #{tpu_custom_call.1} parent=11 // pred_check_branch
          %263 = sbr.rel (%p261) target = $region24
        $region23: #{tpu_custom_call.1} parent=11 // pred_region
          _
        $region24: #{tpu_custom_call.1} parent=11 // pred_fallthru
          _
        // Predicated region
        $region25: #{tpu_custom_call.1} parent=11 // pred_check
          %p264 = pneg %p130
        $region26: #{tpu_custom_call.1} parent=11 // pred_check_branch
          %266 = sbr.rel (%p264) target = $region28
        $region27: #{tpu_custom_call.1} parent=11 // pred_region
          _
        $region28: #{tpu_custom_call.1} parent=11 // pred_fallthru
          _
        // Predicated region
        $region29: #{tpu_custom_call.1} parent=11 // pred_check
          %p267 = pneg %p151
        $region30: #{tpu_custom_call.1} parent=11 // pred_check_branch
          %269 = sbr.rel (%p267) target = $region32
        $region31: #{tpu_custom_call.1} parent=11 // pred_region
          %271 = vsyncadd [#allocation3], 0
          %s272 = sshll.u32 %s5, 4
          %s273 = int_to_ptr.hbm [resolvable:$true] %s272
          %s274 = sshll.u32 [#allocation2], 4
          %s275 = int_to_ptr.vmem [resolvable:$true] %s274
          %280 = dma.hbm_to_vmem [thread:$0]  %s273, 1024, %s275, [#allocation3], 64, 64, 4
        $region32: #{tpu_custom_call.1} parent=11 // pred_fallthru
          _
        // Predicated region
        $region33: #{tpu_custom_call.1} parent=11 // pred_check
          %p281 = pneg %p172
        $region34: #{tpu_custom_call.1} parent=11 // pred_check_branch
          %283 = sbr.rel (%p281) target = $region36
        $region35: #{tpu_custom_call.1} parent=11 // pred_region
          _
        $region36: #{tpu_custom_call.1} parent=11 // pred_fallthru
          _
        // Predicated region
        $region37: #{tpu_custom_call.1} parent=11 // pred_check
          %p284 = pneg %p193
        $region38: #{tpu_custom_call.1} parent=11 // pred_check_branch
          %286 = sbr.rel (%p284) target = $region40
        $region39: #{tpu_custom_call.1} parent=11 // pred_region
          %288 = vsyncadd [#allocation6], 0
          %s289 = sshll.u32 %s7, 4
          %s290 = int_to_ptr.hbm [resolvable:$true] %s289
          %s291 = sshll.u32 [#allocation5], 4
          %s292 = int_to_ptr.vmem [resolvable:$true] %s291
          %297 = dma.hbm_to_vmem [thread:$0]  %s290, 1024, %s292, [#allocation6], 64, 64, 4
        $region40: #{tpu_custom_call.1} parent=11 // pred_fallthru
          _
        // Predicated region
        $region41: #{tpu_custom_call.1} parent=11 // pred_check
          %p298 = pneg %p214
        $region42: #{tpu_custom_call.1} parent=11 // pred_check_branch
          %300 = sbr.rel (%p298) target = $region44
        $region43: #{tpu_custom_call.1} parent=11 // pred_region
          _
        $region44: #{tpu_custom_call.1} parent=11 // pred_fallthru
          _
      $region12: #{tpu_custom_call.1} parent=5 // pred_fallthru
        _
      %p301 = scmp.lt.s32.totalorder %s20, 2
      // Predicated region
      $region45: #{tpu_custom_call.1} parent=5 // pred_check
        %p302 = pneg %p301
      $region46: #{tpu_custom_call.1} parent=5 // pred_check_branch
        %304 = sbr.rel (%p302) target = $region48
      $region47: #{tpu_custom_call.1} parent=5 // pred_region
        // Predicated region
        $region49: #{tpu_custom_call.1} parent=47 // pred_check
          %p305 = pneg %p40
        $region50: #{tpu_custom_call.1} parent=47 // pred_check_branch
          %307 = sbr.rel (%p305) target = $region52
        $region51: #{tpu_custom_call.1} parent=47 // pred_region
          %s308 = smul.u32 16, %s20
          %p309 = scmp.lt.s32.totalorder %s308, 31
          %s310 = scalar_select %p309, %s308, 31
          %s311 = smul.addr %s310, 4
          %s312 = scalar_lea.vmem %s0, %s311
          %s313 = smul.u32 16, %s20
        $region52: #{tpu_custom_call.1} parent=47 // pred_fallthru
          _
      $region48: #{tpu_custom_call.1} parent=5 // pred_fallthru
        _
      %p314 = scmp.le.s32.totalorder 1, %s20
      %p315 = scmp.lt.s32.totalorder %s20, 3
      %p316 = pnand %p314, %p315
      %p317 = pneg %p316
      // Predicated region
      $region53: #{tpu_custom_call.1} parent=5 // pred_check
        _
      $region54: #{tpu_custom_call.1} parent=5 // pred_check_branch
        %319 = sbr.rel (%p316) target = $region56
      $region55: #{tpu_custom_call.1} parent=5 // pred_region
        %s320 = ssub.s32 %s20, 1
        // Predicated region
        $region57: #{tpu_custom_call.1} parent=55 // pred_check
          %p321 = pneg %p151
        $region58: #{tpu_custom_call.1} parent=55 // pred_check_branch
          %323 = sbr.rel (%p321) target = $region60
        $region59: #{tpu_custom_call.1} parent=55 // pred_region
          %325 = dma.done [#allocation3], 1024
        $region60: #{tpu_custom_call.1} parent=55 // pred_fallthru
          _
        // Predicated region
        $region61: #{tpu_custom_call.1} parent=55 // pred_check
          %p326 = pneg %p193
        $region62: #{tpu_custom_call.1} parent=55 // pred_check_branch
          %328 = sbr.rel (%p326) target = $region64
        $region63: #{tpu_custom_call.1} parent=55 // pred_region
          %330 = dma.done [#allocation6], 1024
        $region64: #{tpu_custom_call.1} parent=55 // pred_fallthru
          _
        %s331 = smul.u32 16, %s25
        %p332 = scmp.lt.s32.totalorder %s331, 31
        %s333 = scalar_select %p332, %s331, 31
        %s334 = smul.addr %s333, 4
        %s335 = scalar_lea.vmem %s0, %s334
        %p336 = pneg %p46
        %p337 = pneg %p43
        %p338 = pneg %p67
        %p339 = pneg %p64
        %p340 = pneg %p88
        %p341 = pneg %p85
        %p342 = pneg %p109
        %p343 = pneg %p106
        %p344 = pneg %p130
        %p345 = pneg %p127
        %p346 = pneg %p151
        %p347 = pneg %p148
        %p348 = pneg %p172
        %p349 = pneg %p169
        %p350 = pneg %p193
        %p351 = pneg %p190
        %p352 = pneg %p214
        %p353 = pneg %p211
        %p354 = pneg %p240
        %p355 = pneg %p237
        %s356 = sand.u32 %s227, 1
        %s357 = scalar_lea.sflag [#allocation4], %s356
        %s358 = sand.u32 %s227, 1
        %s359 = smul.addr %s358, 128
        %s360 = scalar_lea.vmem [#allocation7], %s359
        %s361 = smul.u32 16, %s25
        %p362 = scmp.lt.s32.totalorder %s361, 31
        %s363 = scalar_select %p362, %s361, 31
        %s364 = smul.addr %s363, 4
        %s365 = scalar_lea.vmem %s0, %s364
        %s366 = smul.u32 16, %s25
        %s367 = smul.u32 16, %s25
        %v369 = vld [vmem:[%s365] sm:$0xf]
        %v370 = vld [vmem:[%s365 + $0x4] sm:$0xf]
        %v371 = vld [vmem:[%s365 + $0x8] sm:$0xf]
        %v372 = vld [vmem:[%s365 + $0xc] sm:$0xf]
        %v373 = vld [vmem:[%s365 + $0x10] sm:$0xf]
        %v374 = vld [vmem:[%s365 + $0x14] sm:$0xf]
        %v375 = vld [vmem:[%s365 + $0x18] sm:$0xf]
        %v376 = vld [vmem:[%s365 + $0x1c] sm:$0xf]
        %v377 = vld [vmem:[%s365 + $0x20] sm:$0xf]
        %v378 = vld [vmem:[%s365 + $0x24] sm:$0xf]
        %v379 = vld [vmem:[%s365 + $0x28] sm:$0xf]
        %v380 = vld [vmem:[%s365 + $0x2c] sm:$0xf]
        %v381 = vld [vmem:[%s365 + $0x30] sm:$0xf]
        %v382 = vld [vmem:[%s365 + $0x34] sm:$0xf]
        %v383 = vld [vmem:[%s365 + $0x38] sm:$0xf]
        %v384 = vld [vmem:[%s365 + $0x3c] sm:$0xf]
        %v385 = vld [vmem:[%s1] sm:$0xff]
        %v386 = vld [vmem:[%s1 + $0x8] sm:$0xff]
        %v387 = vld [vmem:[%s1 + $0x10] sm:$0xff]
        %v388 = vld [vmem:[%s1 + $0x18] sm:$0xff]
        %v389 = vld [vmem:[%s2] sm:$0x3]
        %v391 = vperm.slane %v389, 0
        %v392 = vperm.slane %v389, 1
        %v411 = vunpack.c.l.b16 %v369
        %v412 = vunpack.c.l.b16 %v370
        %v413 = vunpack.c.l.b16 %v371
        %v414 = vunpack.c.l.b16 %v372
        %v415 = vunpack.c.l.b16 %v373
        %v416 = vunpack.c.l.b16 %v374
        %v417 = vunpack.c.l.b16 %v375
        %v418 = vunpack.c.l.b16 %v376
        %v419 = vunpack.c.l.b16 %v377
        %v420 = vunpack.c.l.b16 %v378
        %v421 = vunpack.c.l.b16 %v379
        %v422 = vunpack.c.l.b16 %v380
        %v423 = vunpack.c.l.b16 %v381
        %v424 = vunpack.c.l.b16 %v382
        %v425 = vunpack.c.l.b16 %v383
        %v426 = vunpack.c.l.b16 %v384
        %v427 = vpack.c.b16 %v412, %v411
        %v428 = vpack.c.b16 %v414, %v413
        %v429 = vpack.c.b16 %v416, %v415
        %v430 = vpack.c.b16 %v418, %v417
        %v431 = vpack.c.b16 %v420, %v419
        %v432 = vpack.c.b16 %v422, %v421
        %v433 = vpack.c.b16 %v424, %v423
        %v434 = vpack.c.b16 %v426, %v425
        %v439 = vunpack.c.l.b16 %v385
        %v440 = vunpack.c.h.b16 %v385
        %v441 = vunpack.c.l.b16 %v386
        %v442 = vunpack.c.h.b16 %v386
        %v443 = vunpack.c.l.b16 %v387
        %v444 = vunpack.c.h.b16 %v387
        %v445 = vunpack.c.l.b16 %v388
        %v446 = vunpack.c.h.b16 %v388
        %v447 = vpack.c.b16 %v441, %v439
        %v448 = vpack.c.b16 %v442, %v440
        %v449 = vpack.c.b16 %v445, %v443
        %v450 = vpack.c.b16 %v446, %v444
        %vm455 = vcmask 261120
        %v457 = vsel %vm455, %v427, 0
        %v460 = vsel %vm455, %v428, 0
        %v463 = vsel %vm455, %v429, 0
        %v466 = vsel %vm455, %v430, 0
        %v469 = vsel %vm455, %v431, 0
        %v472 = vsel %vm455, %v432, 0
        %v475 = vsel %vm455, %v433, 0
        %v478 = vsel %vm455, %v434, 0
        %480 = vmatpush.bf16.msra.mxu0 0
        %481 = vmatpush.bf16.msra.mxu0 0
        %482 = vmatpush.bf16.msra.mxu0 0
        %483 = vmatpush.bf16.msra.mxu0 0
        %484 = vmatpush.bf16.msra.mxu0 0
        %485 = vmatpush.bf16.msra.mxu0 0
        %486 = vmatpush.bf16.msra.mxu0 %v449
        %487 = vmatpush.bf16.msra.mxu0 %v447
        %488 = vmatmul.bf16.gmra.mxu0 %v457
        %v489 = vpop.f32.mrf.mxu0
        %v490 = vadd.f32 %v391, %v489
        %v491 = vpop.f32.mrf.mxu0
        %v492 = vadd.f32 %v391, %v491
        %493 = vmatmul.bf16.gmra.mxu0 %v460
        %v494 = vpop.f32.mrf.mxu0
        %v495 = vadd.f32 %v391, %v494
        %v496 = vpop.f32.mrf.mxu0
        %v497 = vadd.f32 %v391, %v496
        %498 = vmatmul.bf16.gmra.mxu0 %v463
        %v499 = vpop.f32.mrf.mxu0
        %v500 = vadd.f32 %v391, %v499
        %v501 = vpop.f32.mrf.mxu0
        %v502 = vadd.f32 %v391, %v501
        %503 = vmatmul.bf16.gmra.mxu0 %v466
        %v504 = vpop.f32.mrf.mxu0
        %v505 = vadd.f32 %v391, %v504
        %v506 = vpop.f32.mrf.mxu0
        %v507 = vadd.f32 %v391, %v506
        %508 = vmatmul.bf16.gmra.mxu0 %v469
        %v509 = vpop.f32.mrf.mxu0
        %v510 = vadd.f32 %v391, %v509
        %v511 = vpop.f32.mrf.mxu0
        %v512 = vadd.f32 %v391, %v511
        %513 = vmatmul.bf16.gmra.mxu0 %v472
        %v514 = vpop.f32.mrf.mxu0
        %v515 = vadd.f32 %v391, %v514
        %v516 = vpop.f32.mrf.mxu0
        %v517 = vadd.f32 %v391, %v516
        %518 = vmatmul.bf16.gmra.mxu0 %v475
        %v519 = vpop.f32.mrf.mxu0
        %v520 = vadd.f32 %v391, %v519
        %v521 = vpop.f32.mrf.mxu0
        %v522 = vadd.f32 %v391, %v521
        %523 = vmatmul.bf16.gmra.mxu0 %v478
        %v524 = vpop.f32.mrf.mxu0
        %v525 = vadd.f32 %v391, %v524
        %v526 = vpop.f32.mrf.mxu0
        %v527 = vadd.f32 %v391, %v526
        %528 = vdwg.mxu0
        %529 = vmatpush.bf16.msra.mxu0 0
        %530 = vmatpush.bf16.msra.mxu0 0
        %531 = vmatpush.bf16.msra.mxu0 0
        %532 = vmatpush.bf16.msra.mxu0 0
        %533 = vmatpush.bf16.msra.mxu0 0
        %534 = vmatpush.bf16.msra.mxu0 0
        %535 = vmatpush.bf16.msra.mxu0 %v450
        %536 = vmatpush.bf16.msra.mxu0 %v448
        %537 = vmatmul.bf16.gmra.mxu0 %v457
        %v538 = vpop.f32.mrf.mxu0
        %v539 = vadd.f32 %v392, %v538
        %v540 = vpop.f32.mrf.mxu0
        %v541 = vadd.f32 %v392, %v540
        %542 = vmatmul.bf16.gmra.mxu0 %v460
        %v543 = vpop.f32.mrf.mxu0
        %v544 = vadd.f32 %v392, %v543
        %v545 = vpop.f32.mrf.mxu0
        %v546 = vadd.f32 %v392, %v545
        %547 = vmatmul.bf16.gmra.mxu0 %v463
        %v548 = vpop.f32.mrf.mxu0
        %v549 = vadd.f32 %v392, %v548
        %v550 = vpop.f32.mrf.mxu0
        %v551 = vadd.f32 %v392, %v550
        %552 = vmatmul.bf16.gmra.mxu0 %v466
        %v553 = vpop.f32.mrf.mxu0
        %v554 = vadd.f32 %v392, %v553
        %v555 = vpop.f32.mrf.mxu0
        %v556 = vadd.f32 %v392, %v555
        %557 = vmatmul.bf16.gmra.mxu0 %v469
        %v558 = vpop.f32.mrf.mxu0
        %v559 = vadd.f32 %v392, %v558
        %v560 = vpop.f32.mrf.mxu0
        %v561 = vadd.f32 %v392, %v560
        %562 = vmatmul.bf16.gmra.mxu0 %v472
        %v563 = vpop.f32.mrf.mxu0
        %v564 = vadd.f32 %v392, %v563
        %v565 = vpop.f32.mrf.mxu0
        %v566 = vadd.f32 %v392, %v565
        %567 = vmatmul.bf16.gmra.mxu0 %v475
        %v568 = vpop.f32.mrf.mxu0
        %v569 = vadd.f32 %v392, %v568
        %v570 = vpop.f32.mrf.mxu0
        %v571 = vadd.f32 %v392, %v570
        %572 = vmatmul.bf16.gmra.mxu0 %v478
        %v573 = vpop.f32.mrf.mxu0
        %v574 = vadd.f32 %v392, %v573
        %v575 = vpop.f32.mrf.mxu0
        %v576 = vadd.f32 %v392, %v575
        %577 = vdwg.mxu0
        %vm578 = vcmp.gt.f32.partialorder %v490, 0.0
        %vm579 = vcmp.gt.f32.partialorder %v539, 0.0
        %vm580 = vcmp.gt.f32.partialorder %v492, 0.0
        %vm581 = vcmp.gt.f32.partialorder %v541, 0.0
        %vm582 = vcmp.gt.f32.partialorder %v495, 0.0
        %vm583 = vcmp.gt.f32.partialorder %v544, 0.0
        %vm584 = vcmp.gt.f32.partialorder %v497, 0.0
        %vm585 = vcmp.gt.f32.partialorder %v546, 0.0
        %vm586 = vcmp.gt.f32.partialorder %v500, 0.0
        %vm587 = vcmp.gt.f32.partialorder %v549, 0.0
        %vm588 = vcmp.gt.f32.partialorder %v502, 0.0
        %vm589 = vcmp.gt.f32.partialorder %v551, 0.0
        %vm590 = vcmp.gt.f32.partialorder %v505, 0.0
        %vm591 = vcmp.gt.f32.partialorder %v554, 0.0
        %vm592 = vcmp.gt.f32.partialorder %v507, 0.0
        %vm593 = vcmp.gt.f32.partialorder %v556, 0.0
        %vm594 = vcmp.gt.f32.partialorder %v510, 0.0
        %vm595 = vcmp.gt.f32.partialorder %v559, 0.0
        %vm596 = vcmp.gt.f32.partialorder %v512, 0.0
        %vm597 = vcmp.gt.f32.partialorder %v561, 0.0
        %vm598 = vcmp.gt.f32.partialorder %v515, 0.0
        %vm599 = vcmp.gt.f32.partialorder %v564, 0.0
        %vm600 = vcmp.gt.f32.partialorder %v517, 0.0
        %vm601 = vcmp.gt.f32.partialorder %v566, 0.0
        %vm602 = vcmp.gt.f32.partialorder %v520, 0.0
        %vm603 = vcmp.gt.f32.partialorder %v569, 0.0
        %vm604 = vcmp.gt.f32.partialorder %v522, 0.0
        %vm605 = vcmp.gt.f32.partialorder %v571, 0.0
        %vm606 = vcmp.gt.f32.partialorder %v525, 0.0
        %vm607 = vcmp.gt.f32.partialorder %v574, 0.0
        %vm608 = vcmp.gt.f32.partialorder %v527, 0.0
        %vm609 = vcmp.gt.f32.partialorder %v576, 0.0
        %v610 = vmin.f32 %v490, 0.0
        %v611 = vmin.f32 %v539, 0.0
        %v612 = vmin.f32 %v492, 0.0
        %v613 = vmin.f32 %v541, 0.0
        %v614 = vmin.f32 %v495, 0.0
        %v615 = vmin.f32 %v544, 0.0
        %v616 = vmin.f32 %v497, 0.0
        %v617 = vmin.f32 %v546, 0.0
        %v618 = vmin.f32 %v500, 0.0
        %v619 = vmin.f32 %v549, 0.0
        %v620 = vmin.f32 %v502, 0.0
        %v621 = vmin.f32 %v551, 0.0
        %v622 = vmin.f32 %v505, 0.0
        %v623 = vmin.f32 %v554, 0.0
        %v624 = vmin.f32 %v507, 0.0
        %v625 = vmin.f32 %v556, 0.0
        %v626 = vmin.f32 %v510, 0.0
        %v627 = vmin.f32 %v559, 0.0
        %v628 = vmin.f32 %v512, 0.0
        %v629 = vmin.f32 %v561, 0.0
        %v630 = vmin.f32 %v515, 0.0
        %v631 = vmin.f32 %v564, 0.0
        %v632 = vmin.f32 %v517, 0.0
        %v633 = vmin.f32 %v566, 0.0
        %v634 = vmin.f32 %v520, 0.0
        %v635 = vmin.f32 %v569, 0.0
        %v636 = vmin.f32 %v522, 0.0
        %v637 = vmin.f32 %v571, 0.0
        %v638 = vmin.f32 %v525, 0.0
        %v639 = vmin.f32 %v574, 0.0
        %v640 = vmin.f32 %v527, 0.0
        %v641 = vmin.f32 %v576, 0.0
        %v642 = vmul.f32 %v610, 1.442695
        %v643 = vpow.pop %v642
        %v644 = vmul.f32 %v611, 1.442695
        %v645 = vpow.pop %v644
        %v646 = vmul.f32 %v612, 1.442695
        %v647 = vpow.pop %v646
        %v648 = vmul.f32 %v613, 1.442695
        %v649 = vpow.pop %v648
        %v650 = vmul.f32 %v614, 1.442695
        %v651 = vpow.pop %v650
        %v652 = vmul.f32 %v615, 1.442695
        %v653 = vpow.pop %v652
        %v654 = vmul.f32 %v616, 1.442695
        %v655 = vpow.pop %v654
        %v656 = vmul.f32 %v617, 1.442695
        %v657 = vpow.pop %v656
        %v658 = vmul.f32 %v618, 1.442695
        %v659 = vpow.pop %v658
        %v660 = vmul.f32 %v619, 1.442695
        %v661 = vpow.pop %v660
        %v662 = vmul.f32 %v620, 1.442695
        %v663 = vpow.pop %v662
        %v664 = vmul.f32 %v621, 1.442695
        %v665 = vpow.pop %v664
        %v666 = vmul.f32 %v622, 1.442695
        %v667 = vpow.pop %v666
        %v668 = vmul.f32 %v623, 1.442695
        %v669 = vpow.pop %v668
        %v670 = vmul.f32 %v624, 1.442695
        %v671 = vpow.pop %v670
        %v672 = vmul.f32 %v625, 1.442695
        %v673 = vpow.pop %v672
        %v674 = vmul.f32 %v626, 1.442695
        %v675 = vpow.pop %v674
        %v676 = vmul.f32 %v627, 1.442695
        %v677 = vpow.pop %v676
        %v678 = vmul.f32 %v628, 1.442695
        %v679 = vpow.pop %v678
        %v680 = vmul.f32 %v629, 1.442695
        %v681 = vpow.pop %v680
        %v682 = vmul.f32 %v630, 1.442695
        %v683 = vpow.pop %v682
        %v684 = vmul.f32 %v631, 1.442695
        %v685 = vpow.pop %v684
        %v686 = vmul.f32 %v632, 1.442695
        %v687 = vpow.pop %v686
        %v688 = vmul.f32 %v633, 1.442695
        %v689 = vpow.pop %v688
        %v690 = vmul.f32 %v634, 1.442695
        %v691 = vpow.pop %v690
        %v692 = vmul.f32 %v635, 1.442695
        %v693 = vpow.pop %v692
        %v694 = vmul.f32 %v636, 1.442695
        %v695 = vpow.pop %v694
        %v696 = vmul.f32 %v637, 1.442695
        %v697 = vpow.pop %v696
        %v698 = vmul.f32 %v638, 1.442695
        %v699 = vpow.pop %v698
        %v700 = vmul.f32 %v639, 1.442695
        %v701 = vpow.pop %v700
        %v702 = vmul.f32 %v640, 1.442695
        %v703 = vpow.pop %v702
        %v704 = vmul.f32 %v641, 1.442695
        %v705 = vpow.pop %v704
        %v706 = vsub.f32 %v643, 1.0
        %v707 = vsub.f32 %v645, 1.0
        %v708 = vsub.f32 %v647, 1.0
        %v709 = vsub.f32 %v649, 1.0
        %v710 = vsub.f32 %v651, 1.0
        %v711 = vsub.f32 %v653, 1.0
        %v712 = vsub.f32 %v655, 1.0
        %v713 = vsub.f32 %v657, 1.0
        %v714 = vsub.f32 %v659, 1.0
        %v715 = vsub.f32 %v661, 1.0
        %v716 = vsub.f32 %v663, 1.0
        %v717 = vsub.f32 %v665, 1.0
        %v718 = vsub.f32 %v667, 1.0
        %v719 = vsub.f32 %v669, 1.0
        %v720 = vsub.f32 %v671, 1.0
        %v721 = vsub.f32 %v673, 1.0
        %v722 = vsub.f32 %v675, 1.0
        %v723 = vsub.f32 %v677, 1.0
        %v724 = vsub.f32 %v679, 1.0
        %v725 = vsub.f32 %v681, 1.0
        %v726 = vsub.f32 %v683, 1.0
        %v727 = vsub.f32 %v685, 1.0
        %v728 = vsub.f32 %v687, 1.0
        %v729 = vsub.f32 %v689, 1.0
        %v730 = vsub.f32 %v691, 1.0
        %v731 = vsub.f32 %v693, 1.0
        %v732 = vsub.f32 %v695, 1.0
        %v733 = vsub.f32 %v697, 1.0
        %v734 = vsub.f32 %v699, 1.0
        %v735 = vsub.f32 %v701, 1.0
        %v736 = vsub.f32 %v703, 1.0
        %v737 = vsub.f32 %v705, 1.0
        %v738 = vsel %vm578, %v490, %v706
        %v739 = vsel %vm579, %v539, %v707
        %v740 = vsel %vm580, %v492, %v708
        %v741 = vsel %vm581, %v541, %v709
        %v742 = vsel %vm582, %v495, %v710
        %v743 = vsel %vm583, %v544, %v711
        %v744 = vsel %vm584, %v497, %v712
        %v745 = vsel %vm585, %v546, %v713
        %v746 = vsel %vm586, %v500, %v714
        %v747 = vsel %vm587, %v549, %v715
        %v748 = vsel %vm588, %v502, %v716
        %v749 = vsel %vm589, %v551, %v717
        %v750 = vsel %vm590, %v505, %v718
        %v751 = vsel %vm591, %v554, %v719
        %v752 = vsel %vm592, %v507, %v720
        %v753 = vsel %vm593, %v556, %v721
        %v754 = vsel %vm594, %v510, %v722
        %v755 = vsel %vm595, %v559, %v723
        %v756 = vsel %vm596, %v512, %v724
        %v757 = vsel %vm597, %v561, %v725
        %v758 = vsel %vm598, %v515, %v726
        %v759 = vsel %vm599, %v564, %v727
        %v760 = vsel %vm600, %v517, %v728
        %v761 = vsel %vm601, %v566, %v729
        %v762 = vsel %vm602, %v520, %v730
        %v763 = vsel %vm603, %v569, %v731
        %v764 = vsel %vm604, %v522, %v732
        %v765 = vsel %vm605, %v571, %v733
        %v766 = vsel %vm606, %v525, %v734
        %v767 = vsel %vm607, %v574, %v735
        %v768 = vsel %vm608, %v527, %v736
        %v769 = vsel %vm609, %v576, %v737
        %v770 = vpack.c.bf16 %v740, %v738
        %v771 = vpack.c.bf16 %v741, %v739
        %v772 = vpack.c.bf16 %v744, %v742
        %v773 = vpack.c.bf16 %v745, %v743
        %v774 = vpack.c.bf16 %v748, %v746
        %v775 = vpack.c.bf16 %v749, %v747
        %v776 = vpack.c.bf16 %v752, %v750
        %v777 = vpack.c.bf16 %v753, %v751
        %v778 = vpack.c.bf16 %v756, %v754
        %v779 = vpack.c.bf16 %v757, %v755
        %v780 = vpack.c.bf16 %v760, %v758
        %v781 = vpack.c.bf16 %v761, %v759
        %v782 = vpack.c.bf16 %v764, %v762
        %v783 = vpack.c.bf16 %v765, %v763
        %v784 = vpack.c.bf16 %v768, %v766
        %v785 = vpack.c.bf16 %v769, %v767
        %v786 = vld [vmem:[%s3] sm:$0xf]
        %v787 = vld [vmem:[%s3 + $0x4] sm:$0xf]
        %v788 = vld [vmem:[%s3 + $0x8] sm:$0xf]
        %v789 = vld [vmem:[%s3 + $0xc] sm:$0xf]
        %v790 = vld [vmem:[%s3 + $0x10] sm:$0xf]
        %v791 = vld [vmem:[%s3 + $0x14] sm:$0xf]
        %v792 = vld [vmem:[%s3 + $0x18] sm:$0xf]
        %v793 = vld [vmem:[%s3 + $0x1c] sm:$0xf]
        %v794 = vld [vmem:[%s3 + $0x20] sm:$0xf]
        %v795 = vld [vmem:[%s3 + $0x24] sm:$0xf]
        %v796 = vld [vmem:[%s3 + $0x28] sm:$0xf]
        %v797 = vld [vmem:[%s3 + $0x2c] sm:$0xf]
        %v798 = vld [vmem:[%s3 + $0x30] sm:$0xf]
        %v799 = vld [vmem:[%s3 + $0x34] sm:$0xf]
        %v800 = vld [vmem:[%s3 + $0x38] sm:$0xf]
        %v801 = vld [vmem:[%s3 + $0x3c] sm:$0xf]
        %v802 = vld [vmem:[%s3 + $0x40] sm:$0xf]
        %v803 = vld [vmem:[%s3 + $0x44] sm:$0xf]
        %v804 = vld [vmem:[%s3 + $0x48] sm:$0xf]
        %v805 = vld [vmem:[%s3 + $0x4c] sm:$0xf]
        %v806 = vld [vmem:[%s3 + $0x50] sm:$0xf]
        %v807 = vld [vmem:[%s3 + $0x54] sm:$0xf]
        %v808 = vld [vmem:[%s3 + $0x58] sm:$0xf]
        %v809 = vld [vmem:[%s3 + $0x5c] sm:$0xf]
        %v810 = vld [vmem:[%s3 + $0x60] sm:$0xf]
        %v811 = vld [vmem:[%s3 + $0x64] sm:$0xf]
        %v812 = vld [vmem:[%s3 + $0x68] sm:$0xf]
        %v813 = vld [vmem:[%s3 + $0x6c] sm:$0xf]
        %v814 = vld [vmem:[%s3 + $0x70] sm:$0xf]
        %v815 = vld [vmem:[%s3 + $0x74] sm:$0xf]
        %v816 = vld [vmem:[%s3 + $0x78] sm:$0xf]
        %v817 = vld [vmem:[%s3 + $0x7c] sm:$0xf]
        %v818 = vld [vmem:[%s4] sm:$0x1]
        %v820 = vperm.slane %v818, 0
        %v854 = vunpack.c.l.b16 %v786
        %v855 = vunpack.c.l.b16 %v787
        %v856 = vunpack.c.l.b16 %v788
        %v857 = vunpack.c.l.b16 %v789
        %v858 = vunpack.c.l.b16 %v790
        %v859 = vunpack.c.l.b16 %v791
        %v860 = vunpack.c.l.b16 %v792
        %v861 = vunpack.c.l.b16 %v793
        %v862 = vunpack.c.l.b16 %v794
        %v863 = vunpack.c.l.b16 %v795
        %v864 = vunpack.c.l.b16 %v796
        %v865 = vunpack.c.l.b16 %v797
        %v866 = vunpack.c.l.b16 %v798
        %v867 = vunpack.c.l.b16 %v799
        %v868 = vunpack.c.l.b16 %v800
        %v869 = vunpack.c.l.b16 %v801
        %v870 = vunpack.c.l.b16 %v802
        %v871 = vunpack.c.l.b16 %v803
        %v872 = vunpack.c.l.b16 %v804
        %v873 = vunpack.c.l.b16 %v805
        %v874 = vunpack.c.l.b16 %v806
        %v875 = vunpack.c.l.b16 %v807
        %v876 = vunpack.c.l.b16 %v808
        %v877 = vunpack.c.l.b16 %v809
        %v878 = vunpack.c.l.b16 %v810
        %v879 = vunpack.c.l.b16 %v811
        %v880 = vunpack.c.l.b16 %v812
        %v881 = vunpack.c.l.b16 %v813
        %v882 = vunpack.c.l.b16 %v814
        %v883 = vunpack.c.l.b16 %v815
        %v884 = vunpack.c.l.b16 %v816
        %v885 = vunpack.c.l.b16 %v817
        %v886 = vpack.c.b16 %v855, %v854
        %v887 = vpack.c.b16 %v857, %v856
        %v888 = vpack.c.b16 %v859, %v858
        %v889 = vpack.c.b16 %v861, %v860
        %v890 = vpack.c.b16 %v863, %v862
        %v891 = vpack.c.b16 %v865, %v864
        %v892 = vpack.c.b16 %v867, %v866
        %v893 = vpack.c.b16 %v869, %v868
        %v894 = vpack.c.b16 %v871, %v870
        %v895 = vpack.c.b16 %v873, %v872
        %v896 = vpack.c.b16 %v875, %v874
        %v897 = vpack.c.b16 %v877, %v876
        %v898 = vpack.c.b16 %v879, %v878
        %v899 = vpack.c.b16 %v881, %v880
        %v900 = vpack.c.b16 %v883, %v882
        %v901 = vpack.c.b16 %v885, %v884
        %918 = vmatpush.bf16.msra.mxu0 %v893
        %919 = vmatpush.bf16.msra.mxu0 %v892
        %920 = vmatpush.bf16.msra.mxu0 %v891
        %921 = vmatpush.bf16.msra.mxu0 %v890
        %922 = vmatpush.bf16.msra.mxu0 %v889
        %923 = vmatpush.bf16.msra.mxu0 %v888
        %924 = vmatpush.bf16.msra.mxu0 %v887
        %925 = vmatpush.bf16.msra.mxu0 %v886
        %926 = vmatmul.bf16.gmra.mxu0 %v770
        %v927 = vpop.f32.mrf.mxu0
        %v928 = vadd.f32 %v820, %v927
        %v929 = vpop.f32.mrf.mxu0
        %v930 = vadd.f32 %v820, %v929
        %931 = vmatmul.bf16.gmra.mxu0 %v772
        %v932 = vpop.f32.mrf.mxu0
        %v933 = vadd.f32 %v820, %v932
        %v934 = vpop.f32.mrf.mxu0
        %v935 = vadd.f32 %v820, %v934
        %936 = vmatmul.bf16.gmra.mxu0 %v774
        %v937 = vpop.f32.mrf.mxu0
        %v938 = vadd.f32 %v820, %v937
        %v939 = vpop.f32.mrf.mxu0
        %v940 = vadd.f32 %v820, %v939
        %941 = vmatmul.bf16.gmra.mxu0 %v776
        %v942 = vpop.f32.mrf.mxu0
        %v943 = vadd.f32 %v820, %v942
        %v944 = vpop.f32.mrf.mxu0
        %v945 = vadd.f32 %v820, %v944
        %946 = vmatmul.bf16.gmra.mxu0 %v778
        %v947 = vpop.f32.mrf.mxu0
        %v948 = vadd.f32 %v820, %v947
        %v949 = vpop.f32.mrf.mxu0
        %v950 = vadd.f32 %v820, %v949
        %951 = vmatmul.bf16.gmra.mxu0 %v780
        %v952 = vpop.f32.mrf.mxu0
        %v953 = vadd.f32 %v820, %v952
        %v954 = vpop.f32.mrf.mxu0
        %v955 = vadd.f32 %v820, %v954
        %956 = vmatmul.bf16.gmra.mxu0 %v782
        %v957 = vpop.f32.mrf.mxu0
        %v958 = vadd.f32 %v820, %v957
        %v959 = vpop.f32.mrf.mxu0
        %v960 = vadd.f32 %v820, %v959
        %961 = vmatmul.bf16.gmra.mxu0 %v784
        %v962 = vpop.f32.mrf.mxu0
        %v963 = vadd.f32 %v820, %v962
        %v964 = vpop.f32.mrf.mxu0
        %v965 = vadd.f32 %v820, %v964
        %966 = vdwg.mxu0
        %967 = vmatpush.bf16.msra.mxu0 %v901
        %968 = vmatpush.bf16.msra.mxu0 %v900
        %969 = vmatpush.bf16.msra.mxu0 %v899
        %970 = vmatpush.bf16.msra.mxu0 %v898
        %971 = vmatpush.bf16.msra.mxu0 %v897
        %972 = vmatpush.bf16.msra.mxu0 %v896
        %973 = vmatpush.bf16.msra.mxu0 %v895
        %974 = vmatpush.bf16.msra.mxu0 %v894
        %975 = vmatmul.bf16.gmra.mxu0 %v771
        %v976 = vpop.f32.mrf.mxu0
        %v977 = vadd.f32 %v928, %v976
        %v978 = vpop.f32.mrf.mxu0
        %v979 = vadd.f32 %v930, %v978
        %980 = vmatmul.bf16.gmra.mxu0 %v773
        %v981 = vpop.f32.mrf.mxu0
        %v982 = vadd.f32 %v933, %v981
        %v983 = vpop.f32.mrf.mxu0
        %v984 = vadd.f32 %v935, %v983
        %985 = vmatmul.bf16.gmra.mxu0 %v775
        %v986 = vpop.f32.mrf.mxu0
        %v987 = vadd.f32 %v938, %v986
        %v988 = vpop.f32.mrf.mxu0
        %v989 = vadd.f32 %v940, %v988
        %990 = vmatmul.bf16.gmra.mxu0 %v777
        %v991 = vpop.f32.mrf.mxu0
        %v992 = vadd.f32 %v943, %v991
        %v993 = vpop.f32.mrf.mxu0
        %v994 = vadd.f32 %v945, %v993
        %995 = vmatmul.bf16.gmra.mxu0 %v779
        %v996 = vpop.f32.mrf.mxu0
        %v997 = vadd.f32 %v948, %v996
        %v998 = vpop.f32.mrf.mxu0
        %v999 = vadd.f32 %v950, %v998
        %1000 = vmatmul.bf16.gmra.mxu0 %v781
        %v1001 = vpop.f32.mrf.mxu0
        %v1002 = vadd.f32 %v953, %v1001
        %v1003 = vpop.f32.mrf.mxu0
        %v1004 = vadd.f32 %v955, %v1003
        %1005 = vmatmul.bf16.gmra.mxu0 %v783
        %v1006 = vpop.f32.mrf.mxu0
        %v1007 = vadd.f32 %v958, %v1006
        %v1008 = vpop.f32.mrf.mxu0
        %v1009 = vadd.f32 %v960, %v1008
        %1010 = vmatmul.bf16.gmra.mxu0 %v785
        %v1011 = vpop.f32.mrf.mxu0
        %v1012 = vadd.f32 %v963, %v1011
        %v1013 = vpop.f32.mrf.mxu0
        %v1014 = vadd.f32 %v965, %v1013
        %1015 = vdwg.mxu0
        %vm1016 = vcmp.gt.f32.partialorder %v977, 0.0
        %vm1017 = vcmp.gt.f32.partialorder %v979, 0.0
        %vm1018 = vcmp.gt.f32.partialorder %v982, 0.0
        %vm1019 = vcmp.gt.f32.partialorder %v984, 0.0
        %vm1020 = vcmp.gt.f32.partialorder %v987, 0.0
        %vm1021 = vcmp.gt.f32.partialorder %v989, 0.0
        %vm1022 = vcmp.gt.f32.partialorder %v992, 0.0
        %vm1023 = vcmp.gt.f32.partialorder %v994, 0.0
        %vm1024 = vcmp.gt.f32.partialorder %v997, 0.0
        %vm1025 = vcmp.gt.f32.partialorder %v999, 0.0
        %vm1026 = vcmp.gt.f32.partialorder %v1002, 0.0
        %vm1027 = vcmp.gt.f32.partialorder %v1004, 0.0
        %vm1028 = vcmp.gt.f32.partialorder %v1007, 0.0
        %vm1029 = vcmp.gt.f32.partialorder %v1009, 0.0
        %vm1030 = vcmp.gt.f32.partialorder %v1012, 0.0
        %vm1031 = vcmp.gt.f32.partialorder %v1014, 0.0
        %v1032 = vmin.f32 %v977, 0.0
        %v1033 = vmin.f32 %v979, 0.0
        %v1034 = vmin.f32 %v982, 0.0
        %v1035 = vmin.f32 %v984, 0.0
        %v1036 = vmin.f32 %v987, 0.0
        %v1037 = vmin.f32 %v989, 0.0
        %v1038 = vmin.f32 %v992, 0.0
        %v1039 = vmin.f32 %v994, 0.0
        %v1040 = vmin.f32 %v997, 0.0
        %v1041 = vmin.f32 %v999, 0.0
        %v1042 = vmin.f32 %v1002, 0.0
        %v1043 = vmin.f32 %v1004, 0.0
        %v1044 = vmin.f32 %v1007, 0.0
        %v1045 = vmin.f32 %v1009, 0.0
        %v1046 = vmin.f32 %v1012, 0.0
        %v1047 = vmin.f32 %v1014, 0.0
        %v1048 = vmul.f32 %v1032, 1.442695
        %v1049 = vpow.pop %v1048
        %v1050 = vmul.f32 %v1033, 1.442695
        %v1051 = vpow.pop %v1050
        %v1052 = vmul.f32 %v1034, 1.442695
        %v1053 = vpow.pop %v1052
        %v1054 = vmul.f32 %v1035, 1.442695
        %v1055 = vpow.pop %v1054
        %v1056 = vmul.f32 %v1036, 1.442695
        %v1057 = vpow.pop %v1056
        %v1058 = vmul.f32 %v1037, 1.442695
        %v1059 = vpow.pop %v1058
        %v1060 = vmul.f32 %v1038, 1.442695
        %v1061 = vpow.pop %v1060
        %v1062 = vmul.f32 %v1039, 1.442695
        %v1063 = vpow.pop %v1062
        %v1064 = vmul.f32 %v1040, 1.442695
        %v1065 = vpow.pop %v1064
        %v1066 = vmul.f32 %v1041, 1.442695
        %v1067 = vpow.pop %v1066
        %v1068 = vmul.f32 %v1042, 1.442695
        %v1069 = vpow.pop %v1068
        %v1070 = vmul.f32 %v1043, 1.442695
        %v1071 = vpow.pop %v1070
        %v1072 = vmul.f32 %v1044, 1.442695
        %v1073 = vpow.pop %v1072
        %v1074 = vmul.f32 %v1045, 1.442695
        %v1075 = vpow.pop %v1074
        %v1076 = vmul.f32 %v1046, 1.442695
        %v1077 = vpow.pop %v1076
        %v1078 = vmul.f32 %v1047, 1.442695
        %v1079 = vpow.pop %v1078
        %v1080 = vsub.f32 %v1049, 1.0
        %v1081 = vsub.f32 %v1051, 1.0
        %v1082 = vsub.f32 %v1053, 1.0
        %v1083 = vsub.f32 %v1055, 1.0
        %v1084 = vsub.f32 %v1057, 1.0
        %v1085 = vsub.f32 %v1059, 1.0
        %v1086 = vsub.f32 %v1061, 1.0
        %v1087 = vsub.f32 %v1063, 1.0
        %v1088 = vsub.f32 %v1065, 1.0
        %v1089 = vsub.f32 %v1067, 1.0
        %v1090 = vsub.f32 %v1069, 1.0
        %v1091 = vsub.f32 %v1071, 1.0
        %v1092 = vsub.f32 %v1073, 1.0
        %v1093 = vsub.f32 %v1075, 1.0
        %v1094 = vsub.f32 %v1077, 1.0
        %v1095 = vsub.f32 %v1079, 1.0
        %v1096 = vsel %vm1016, %v977, %v1080
        %v1097 = vsel %vm1017, %v979, %v1081
        %v1098 = vsel %vm1018, %v982, %v1082
        %v1099 = vsel %vm1019, %v984, %v1083
        %v1100 = vsel %vm1020, %v987, %v1084
        %v1101 = vsel %vm1021, %v989, %v1085
        %v1102 = vsel %vm1022, %v992, %v1086
        %v1103 = vsel %vm1023, %v994, %v1087
        %v1104 = vsel %vm1024, %v997, %v1088
        %v1105 = vsel %vm1025, %v999, %v1089
        %v1106 = vsel %vm1026, %v1002, %v1090
        %v1107 = vsel %vm1027, %v1004, %v1091
        %v1108 = vsel %vm1028, %v1007, %v1092
        %v1109 = vsel %vm1029, %v1009, %v1093
        %v1110 = vsel %vm1030, %v1012, %v1094
        %v1111 = vsel %vm1031, %v1014, %v1095
        %v1112 = vpack.c.bf16 %v1097, %v1096
        %v1113 = vpack.c.bf16 %v1099, %v1098
        %v1114 = vpack.c.bf16 %v1101, %v1100
        %v1115 = vpack.c.bf16 %v1103, %v1102
        %v1116 = vpack.c.bf16 %v1105, %v1104
        %v1117 = vpack.c.bf16 %v1107, %v1106
        %v1118 = vpack.c.bf16 %v1109, %v1108
        %v1119 = vpack.c.bf16 %v1111, %v1110
        %v1120 = vld [vmem:[#allocation2] sm:$0xf]
        %v1121 = vld [vmem:[#allocation2 + $0x4] sm:$0xf]
        %v1122 = vld [vmem:[#allocation2 + $0x8] sm:$0xf]
        %v1123 = vld [vmem:[#allocation2 + $0xc] sm:$0xf]
        %v1124 = vld [vmem:[#allocation2 + $0x10] sm:$0xf]
        %v1125 = vld [vmem:[#allocation2 + $0x14] sm:$0xf]
        %v1126 = vld [vmem:[#allocation2 + $0x18] sm:$0xf]
        %v1127 = vld [vmem:[#allocation2 + $0x1c] sm:$0xf]
        %v1128 = vld [vmem:[#allocation2 + $0x20] sm:$0xf]
        %v1129 = vld [vmem:[#allocation2 + $0x24] sm:$0xf]
        %v1130 = vld [vmem:[#allocation2 + $0x28] sm:$0xf]
        %v1131 = vld [vmem:[#allocation2 + $0x2c] sm:$0xf]
        %v1132 = vld [vmem:[#allocation2 + $0x30] sm:$0xf]
        %v1133 = vld [vmem:[#allocation2 + $0x34] sm:$0xf]
        %v1134 = vld [vmem:[#allocation2 + $0x38] sm:$0xf]
        %v1135 = vld [vmem:[#allocation2 + $0x3c] sm:$0xf]
        %v1136 = vld [vmem:[%s6] sm:$0x1]
        %v1138 = vperm.slane %v1136, 0
        %v1156 = vunpack.c.l.b16 %v1120
        %v1157 = vunpack.c.l.b16 %v1121
        %v1158 = vunpack.c.l.b16 %v1122
        %v1159 = vunpack.c.l.b16 %v1123
        %v1160 = vunpack.c.l.b16 %v1124
        %v1161 = vunpack.c.l.b16 %v1125
        %v1162 = vunpack.c.l.b16 %v1126
        %v1163 = vunpack.c.l.b16 %v1127
        %v1164 = vunpack.c.l.b16 %v1128
        %v1165 = vunpack.c.l.b16 %v1129
        %v1166 = vunpack.c.l.b16 %v1130
        %v1167 = vunpack.c.l.b16 %v1131
        %v1168 = vunpack.c.l.b16 %v1132
        %v1169 = vunpack.c.l.b16 %v1133
        %v1170 = vunpack.c.l.b16 %v1134
        %v1171 = vunpack.c.l.b16 %v1135
        %v1172 = vpack.c.b16 %v1157, %v1156
        %v1173 = vpack.c.b16 %v1159, %v1158
        %v1174 = vpack.c.b16 %v1161, %v1160
        %v1175 = vpack.c.b16 %v1163, %v1162
        %v1176 = vpack.c.b16 %v1165, %v1164
        %v1177 = vpack.c.b16 %v1167, %v1166
        %v1178 = vpack.c.b16 %v1169, %v1168
        %v1179 = vpack.c.b16 %v1171, %v1170
        %1188 = vmatpush.bf16.msra.mxu0 %v1179
        %1189 = vmatpush.bf16.msra.mxu0 %v1178
        %1190 = vmatpush.bf16.msra.mxu0 %v1177
        %1191 = vmatpush.bf16.msra.mxu0 %v1176
        %1192 = vmatpush.bf16.msra.mxu0 %v1175
        %1193 = vmatpush.bf16.msra.mxu0 %v1174
        %1194 = vmatpush.bf16.msra.mxu0 %v1173
        %1195 = vmatpush.bf16.msra.mxu0 %v1172
        %1196 = vmatmul.bf16.gmra.mxu0 %v1112
        %v1197 = vpop.f32.mrf.mxu0
        %v1198 = vadd.f32 %v1138, %v1197
        %v1199 = vpop.f32.mrf.mxu0
        %v1200 = vadd.f32 %v1138, %v1199
        %1201 = vmatmul.bf16.gmra.mxu0 %v1113
        %v1202 = vpop.f32.mrf.mxu0
        %v1203 = vadd.f32 %v1138, %v1202
        %v1204 = vpop.f32.mrf.mxu0
        %v1205 = vadd.f32 %v1138, %v1204
        %1206 = vmatmul.bf16.gmra.mxu0 %v1114
        %v1207 = vpop.f32.mrf.mxu0
        %v1208 = vadd.f32 %v1138, %v1207
        %v1209 = vpop.f32.mrf.mxu0
        %v1210 = vadd.f32 %v1138, %v1209
        %1211 = vmatmul.bf16.gmra.mxu0 %v1115
        %v1212 = vpop.f32.mrf.mxu0
        %v1213 = vadd.f32 %v1138, %v1212
        %v1214 = vpop.f32.mrf.mxu0
        %v1215 = vadd.f32 %v1138, %v1214
        %1216 = vmatmul.bf16.gmra.mxu0 %v1116
        %v1217 = vpop.f32.mrf.mxu0
        %v1218 = vadd.f32 %v1138, %v1217
        %v1219 = vpop.f32.mrf.mxu0
        %v1220 = vadd.f32 %v1138, %v1219
        %1221 = vmatmul.bf16.gmra.mxu0 %v1117
        %v1222 = vpop.f32.mrf.mxu0
        %v1223 = vadd.f32 %v1138, %v1222
        %v1224 = vpop.f32.mrf.mxu0
        %v1225 = vadd.f32 %v1138, %v1224
        %1226 = vmatmul.bf16.gmra.mxu0 %v1118
        %v1227 = vpop.f32.mrf.mxu0
        %v1228 = vadd.f32 %v1138, %v1227
        %v1229 = vpop.f32.mrf.mxu0
        %v1230 = vadd.f32 %v1138, %v1229
        %1231 = vmatmul.bf16.gmra.mxu0 %v1119
        %v1232 = vpop.f32.mrf.mxu0
        %v1233 = vadd.f32 %v1138, %v1232
        %v1234 = vpop.f32.mrf.mxu0
        %v1235 = vadd.f32 %v1138, %v1234
        %1236 = vdwg.mxu0
        %vm1237 = vcmp.gt.f32.partialorder %v1198, 0.0
        %vm1238 = vcmp.gt.f32.partialorder %v1200, 0.0
        %vm1239 = vcmp.gt.f32.partialorder %v1203, 0.0
        %vm1240 = vcmp.gt.f32.partialorder %v1205, 0.0
        %vm1241 = vcmp.gt.f32.partialorder %v1208, 0.0
        %vm1242 = vcmp.gt.f32.partialorder %v1210, 0.0
        %vm1243 = vcmp.gt.f32.partialorder %v1213, 0.0
        %vm1244 = vcmp.gt.f32.partialorder %v1215, 0.0
        %vm1245 = vcmp.gt.f32.partialorder %v1218, 0.0
        %vm1246 = vcmp.gt.f32.partialorder %v1220, 0.0
        %vm1247 = vcmp.gt.f32.partialorder %v1223, 0.0
        %vm1248 = vcmp.gt.f32.partialorder %v1225, 0.0
        %vm1249 = vcmp.gt.f32.partialorder %v1228, 0.0
        %vm1250 = vcmp.gt.f32.partialorder %v1230, 0.0
        %vm1251 = vcmp.gt.f32.partialorder %v1233, 0.0
        %vm1252 = vcmp.gt.f32.partialorder %v1235, 0.0
        %v1253 = vmin.f32 %v1198, 0.0
        %v1254 = vmin.f32 %v1200, 0.0
        %v1255 = vmin.f32 %v1203, 0.0
        %v1256 = vmin.f32 %v1205, 0.0
        %v1257 = vmin.f32 %v1208, 0.0
        %v1258 = vmin.f32 %v1210, 0.0
        %v1259 = vmin.f32 %v1213, 0.0
        %v1260 = vmin.f32 %v1215, 0.0
        %v1261 = vmin.f32 %v1218, 0.0
        %v1262 = vmin.f32 %v1220, 0.0
        %v1263 = vmin.f32 %v1223, 0.0
        %v1264 = vmin.f32 %v1225, 0.0
        %v1265 = vmin.f32 %v1228, 0.0
        %v1266 = vmin.f32 %v1230, 0.0
        %v1267 = vmin.f32 %v1233, 0.0
        %v1268 = vmin.f32 %v1235, 0.0
        %v1269 = vmul.f32 %v1253, 1.442695
        %v1270 = vpow.pop %v1269
        %v1271 = vmul.f32 %v1254, 1.442695
        %v1272 = vpow.pop %v1271
        %v1273 = vmul.f32 %v1255, 1.442695
        %v1274 = vpow.pop %v1273
        %v1275 = vmul.f32 %v1256, 1.442695
        %v1276 = vpow.pop %v1275
        %v1277 = vmul.f32 %v1257, 1.442695
        %v1278 = vpow.pop %v1277
        %v1279 = vmul.f32 %v1258, 1.442695
        %v1280 = vpow.pop %v1279
        %v1281 = vmul.f32 %v1259, 1.442695
        %v1282 = vpow.pop %v1281
        %v1283 = vmul.f32 %v1260, 1.442695
        %v1284 = vpow.pop %v1283
        %v1285 = vmul.f32 %v1261, 1.442695
        %v1286 = vpow.pop %v1285
        %v1287 = vmul.f32 %v1262, 1.442695
        %v1288 = vpow.pop %v1287
        %v1289 = vmul.f32 %v1263, 1.442695
        %v1290 = vpow.pop %v1289
        %v1291 = vmul.f32 %v1264, 1.442695
        %v1292 = vpow.pop %v1291
        %v1293 = vmul.f32 %v1265, 1.442695
        %v1294 = vpow.pop %v1293
        %v1295 = vmul.f32 %v1266, 1.442695
        %v1296 = vpow.pop %v1295
        %v1297 = vmul.f32 %v1267, 1.442695
        %v1298 = vpow.pop %v1297
        %v1299 = vmul.f32 %v1268, 1.442695
        %v1300 = vpow.pop %v1299
        %v1301 = vsub.f32 %v1270, 1.0
        %v1302 = vsub.f32 %v1272, 1.0
        %v1303 = vsub.f32 %v1274, 1.0
        %v1304 = vsub.f32 %v1276, 1.0
        %v1305 = vsub.f32 %v1278, 1.0
        %v1306 = vsub.f32 %v1280, 1.0
        %v1307 = vsub.f32 %v1282, 1.0
        %v1308 = vsub.f32 %v1284, 1.0
        %v1309 = vsub.f32 %v1286, 1.0
        %v1310 = vsub.f32 %v1288, 1.0
        %v1311 = vsub.f32 %v1290, 1.0
        %v1312 = vsub.f32 %v1292, 1.0
        %v1313 = vsub.f32 %v1294, 1.0
        %v1314 = vsub.f32 %v1296, 1.0
        %v1315 = vsub.f32 %v1298, 1.0
        %v1316 = vsub.f32 %v1300, 1.0
        %v1317 = vsel %vm1237, %v1198, %v1301
        %v1318 = vsel %vm1238, %v1200, %v1302
        %v1319 = vsel %vm1239, %v1203, %v1303
        %v1320 = vsel %vm1240, %v1205, %v1304
        %v1321 = vsel %vm1241, %v1208, %v1305
        %v1322 = vsel %vm1242, %v1210, %v1306
        %v1323 = vsel %vm1243, %v1213, %v1307
        %v1324 = vsel %vm1244, %v1215, %v1308
        %v1325 = vsel %vm1245, %v1218, %v1309
        %v1326 = vsel %vm1246, %v1220, %v1310
        %v1327 = vsel %vm1247, %v1223, %v1311
        %v1328 = vsel %vm1248, %v1225, %v1312
        %v1329 = vsel %vm1249, %v1228, %v1313
        %v1330 = vsel %vm1250, %v1230, %v1314
        %v1331 = vsel %vm1251, %v1233, %v1315
        %v1332 = vsel %vm1252, %v1235, %v1316
        %v1333 = vpack.c.bf16 %v1318, %v1317
        %v1334 = vpack.c.bf16 %v1320, %v1319
        %v1335 = vpack.c.bf16 %v1322, %v1321
        %v1336 = vpack.c.bf16 %v1324, %v1323
        %v1337 = vpack.c.bf16 %v1326, %v1325
        %v1338 = vpack.c.bf16 %v1328, %v1327
        %v1339 = vpack.c.bf16 %v1330, %v1329
        %v1340 = vpack.c.bf16 %v1332, %v1331
        %v1341 = vld [vmem:[#allocation5] sm:$0xf]
        %v1342 = vld [vmem:[#allocation5 + $0x4] sm:$0xf]
        %v1343 = vld [vmem:[#allocation5 + $0x8] sm:$0xf]
        %v1344 = vld [vmem:[#allocation5 + $0xc] sm:$0xf]
        %v1345 = vld [vmem:[#allocation5 + $0x10] sm:$0xf]
        %v1346 = vld [vmem:[#allocation5 + $0x14] sm:$0xf]
        %v1347 = vld [vmem:[#allocation5 + $0x18] sm:$0xf]
        %v1348 = vld [vmem:[#allocation5 + $0x1c] sm:$0xf]
        %v1349 = vld [vmem:[#allocation5 + $0x20] sm:$0xf]
        %v1350 = vld [vmem:[#allocation5 + $0x24] sm:$0xf]
        %v1351 = vld [vmem:[#allocation5 + $0x28] sm:$0xf]
        %v1352 = vld [vmem:[#allocation5 + $0x2c] sm:$0xf]
        %v1353 = vld [vmem:[#allocation5 + $0x30] sm:$0xf]
        %v1354 = vld [vmem:[#allocation5 + $0x34] sm:$0xf]
        %v1355 = vld [vmem:[#allocation5 + $0x38] sm:$0xf]
        %v1356 = vld [vmem:[#allocation5 + $0x3c] sm:$0xf]
        %v1357 = vld [vmem:[%s8] sm:$0x1]
        %v1359 = vperm.slane %v1357, 0
        %v1377 = vunpack.c.l.b16 %v1341
        %v1378 = vunpack.c.l.b16 %v1342
        %v1379 = vunpack.c.l.b16 %v1343
        %v1380 = vunpack.c.l.b16 %v1344
        %v1381 = vunpack.c.l.b16 %v1345
        %v1382 = vunpack.c.l.b16 %v1346
        %v1383 = vunpack.c.l.b16 %v1347
        %v1384 = vunpack.c.l.b16 %v1348
        %v1385 = vunpack.c.l.b16 %v1349
        %v1386 = vunpack.c.l.b16 %v1350
        %v1387 = vunpack.c.l.b16 %v1351
        %v1388 = vunpack.c.l.b16 %v1352
        %v1389 = vunpack.c.l.b16 %v1353
        %v1390 = vunpack.c.l.b16 %v1354
        %v1391 = vunpack.c.l.b16 %v1355
        %v1392 = vunpack.c.l.b16 %v1356
        %v1393 = vpack.c.b16 %v1378, %v1377
        %v1394 = vpack.c.b16 %v1380, %v1379
        %v1395 = vpack.c.b16 %v1382, %v1381
        %v1396 = vpack.c.b16 %v1384, %v1383
        %v1397 = vpack.c.b16 %v1386, %v1385
        %v1398 = vpack.c.b16 %v1388, %v1387
        %v1399 = vpack.c.b16 %v1390, %v1389
        %v1400 = vpack.c.b16 %v1392, %v1391
        %1409 = vmatpush.bf16.msra.mxu0 %v1400
        %1410 = vmatpush.bf16.msra.mxu0 %v1399
        %1411 = vmatpush.bf16.msra.mxu0 %v1398
        %1412 = vmatpush.bf16.msra.mxu0 %v1397
        %1413 = vmatpush.bf16.msra.mxu0 %v1396
        %1414 = vmatpush.bf16.msra.mxu0 %v1395
        %1415 = vmatpush.bf16.msra.mxu0 %v1394
        %1416 = vmatpush.bf16.msra.mxu0 %v1393
        %1417 = vmatmul.bf16.gmra.mxu0 %v1333
        %v1418 = vpop.f32.mrf.mxu0
        %v1419 = vadd.f32 %v1359, %v1418
        %v1420 = vpop.f32.mrf.mxu0
        %v1421 = vadd.f32 %v1359, %v1420
        %1422 = vmatmul.bf16.gmra.mxu0 %v1334
        %v1423 = vpop.f32.mrf.mxu0
        %v1424 = vadd.f32 %v1359, %v1423
        %v1425 = vpop.f32.mrf.mxu0
        %v1426 = vadd.f32 %v1359, %v1425
        %1427 = vmatmul.bf16.gmra.mxu0 %v1335
        %v1428 = vpop.f32.mrf.mxu0
        %v1429 = vadd.f32 %v1359, %v1428
        %v1430 = vpop.f32.mrf.mxu0
        %v1431 = vadd.f32 %v1359, %v1430
        %1432 = vmatmul.bf16.gmra.mxu0 %v1336
        %v1433 = vpop.f32.mrf.mxu0
        %v1434 = vadd.f32 %v1359, %v1433
        %v1435 = vpop.f32.mrf.mxu0
        %v1436 = vadd.f32 %v1359, %v1435
        %1437 = vmatmul.bf16.gmra.mxu0 %v1337
        %v1438 = vpop.f32.mrf.mxu0
        %v1439 = vadd.f32 %v1359, %v1438
        %v1440 = vpop.f32.mrf.mxu0
        %v1441 = vadd.f32 %v1359, %v1440
        %1442 = vmatmul.bf16.gmra.mxu0 %v1338
        %v1443 = vpop.f32.mrf.mxu0
        %v1444 = vadd.f32 %v1359, %v1443
        %v1445 = vpop.f32.mrf.mxu0
        %v1446 = vadd.f32 %v1359, %v1445
        %1447 = vmatmul.bf16.gmra.mxu0 %v1339
        %v1448 = vpop.f32.mrf.mxu0
        %v1449 = vadd.f32 %v1359, %v1448
        %v1450 = vpop.f32.mrf.mxu0
        %v1451 = vadd.f32 %v1359, %v1450
        %1452 = vmatmul.bf16.gmra.mxu0 %v1340
        %v1453 = vpop.f32.mrf.mxu0
        %v1454 = vadd.f32 %v1359, %v1453
        %v1455 = vpop.f32.mrf.mxu0
        %v1456 = vadd.f32 %v1359, %v1455
        %1457 = vdwg.mxu0
        %1458 = vst [vmem:[%s360] sm:$0xff] %v1419
        %1459 = vst [vmem:[%s360 + $0x8] sm:$0xff] %v1421
        %1460 = vst [vmem:[%s360 + $0x10] sm:$0xff] %v1424
        %1461 = vst [vmem:[%s360 + $0x18] sm:$0xff] %v1426
        %1462 = vst [vmem:[%s360 + $0x20] sm:$0xff] %v1429
        %1463 = vst [vmem:[%s360 + $0x28] sm:$0xff] %v1431
        %1464 = vst [vmem:[%s360 + $0x30] sm:$0xff] %v1434
        %1465 = vst [vmem:[%s360 + $0x38] sm:$0xff] %v1436
        %1466 = vst [vmem:[%s360 + $0x40] sm:$0xff] %v1439
        %1467 = vst [vmem:[%s360 + $0x48] sm:$0xff] %v1441
        %1468 = vst [vmem:[%s360 + $0x50] sm:$0xff] %v1444
        %1469 = vst [vmem:[%s360 + $0x58] sm:$0xff] %v1446
        %1470 = vst [vmem:[%s360 + $0x60] sm:$0xff] %v1449
        %1471 = vst [vmem:[%s360 + $0x68] sm:$0xff] %v1451
        %1472 = vst [vmem:[%s360 + $0x70] sm:$0xff] %v1454
        %1473 = vst [vmem:[%s360 + $0x78] sm:$0xff] %v1456
        %s1474 = sand.u32 %s227, 1
        %s1475 = scalar_lea.sflag [#allocation4], %s1474
        %s1476 = sand.u32 %s227, 1
        %s1477 = smul.addr %s1476, 128
        %s1478 = scalar_lea.vmem [#allocation7], %s1477
        // Predicated region
        $region65: #{tpu_custom_call.1} parent=55 // pred_check
          %p1479 = pneg %p237
        $region66: #{tpu_custom_call.1} parent=55 // pred_check_branch
          %1481 = sbr.rel (%p1479) target = $region68
        $region67: #{tpu_custom_call.1} parent=55 // pred_region
          %s1482 = smul.u32 16, %s25
          %1484 = vsyncadd %s1475, 0
          %s1485 = smul.addr %s1482, 8
          %s1486 = scalar_lea.hbm %s9, %s1485
          %s1487 = sshll.u32 %s1478, 4
          %s1488 = int_to_ptr.vmem [resolvable:$true] %s1487
          %s1489 = sshll.u32 %s1486, 4
          %s1490 = int_to_ptr.hbm [resolvable:$true] %s1489
          %1495 = dma.vmem_to_hbm [thread:$0]  %s1488, 2048, %s1490, %s1475, 128, 128, 8
        $region68: #{tpu_custom_call.1} parent=55 // pred_fallthru
          _
      $region56: #{tpu_custom_call.1} parent=5 // pred_fallthru
        _
      %p1496 = scmp.le.s32.totalorder 2, %s20
      // Predicated region
      $region69: #{tpu_custom_call.1} parent=5 // pred_check
        %p1497 = pneg %p1496
      $region70: #{tpu_custom_call.1} parent=5 // pred_check_branch
        %1499 = sbr.rel (%p1497) target = $region72
      $region71: #{tpu_custom_call.1} parent=5 // pred_region
        %s1500 = ssub.s32 %s20, 2
        // Predicated region
        $region73: #{tpu_custom_call.1} parent=71 // pred_check
          %p1501 = pneg %p243
        $region74: #{tpu_custom_call.1} parent=71 // pred_check_branch
          %1503 = sbr.rel (%p1501) target = $region76
        $region75: #{tpu_custom_call.1} parent=71 // pred_region
          %s1504 = sand.u32 %s228, 1
          %s1505 = scalar_lea.sflag [#allocation4], %s1504
          %s1506 = sand.u32 %s228, 1
          %s1507 = smul.addr %s1506, 128
          %s1508 = scalar_lea.vmem [#allocation7], %s1507
          %1510 = dma.done %s1505, 2048
        $region76: #{tpu_custom_call.1} parent=71 // pred_fallthru
          _
      $region72: #{tpu_custom_call.1} parent=5 // pred_fallthru
        _
    $region6: #{tpu_custom_call.1} parent=1 // loop_footer
      %s24 = sadd.s32 1, %s20
    $region7: #{tpu_custom_call.1} parent=1 // loop_footer_branch
      %19 = sbr.rel target = $region3
    $region8: #{tpu_custom_call.1} parent=1 // loop_exit
      _
    %1511 = vsyncpa [#allocation3], 1
    %s1512 = scalar_lea.sflag [#allocation3], 1
    %1513 = vsyncpa %s1512, 1
    %1514 = vsyncpa [#allocation6], 1
    %1515 = vsyncpa [#allocation4], 1
    %s1516 = scalar_lea.sflag [#allocation4], 1
    %1517 = vsyncpa %s1516, 1

</llo_original>
